<compile_context>
chip_gen: v6e
topology: v6e:2x2x1
jax: 0.10.0
libtpu: 0.0.40
codegen_flags: <defaults>
</compile_context>

<pallas_src>
import math

import jax
import jax.numpy as jnp
from jax.experimental import pallas as pl
from jax.experimental.pallas import tpu as pltpu


# ----------------------------------------------------------------------------
# Model hyper-parameters (small, synthetic)
# ----------------------------------------------------------------------------
B = 2                 # batch
C_IMG = 3             # image channels (PIXEL_MEAN/STD length)
H = W = 64            # padded image size (divisible by 32)
STRIDE = 32           # res5 stride
HS, WS = H // STRIDE, W // STRIDE
S = HS * WS           # spatial tokens of res5
C_BACKBONE = 64       # backbone res5 channels (real model: 2048)
HIDDEN = 32           # transformer d_model
NUM_CLASSES = 10
NUM_QUERIES = 8
REL_INPUT_DIM = 16    # cfg.MODEL.REL_HEAD_IN_FEAT_DIM
NUM_DEC_LAYERS = 3    # decoder layers (aux outputs would be per-layer)

K_IN = C_IMG * STRIDE * STRIDE        # 3072 patchified input features
K1 = NUM_CLASSES + 1                  # classes incl. no-object
PROJ_OUT = HIDDEN + REL_INPUT_DIM     # fused input_proj | rel_input_proj width

# packed head-weight slab layout (columns)            widths
HW_CLS, HW_B1, HW_B2, HW_B3, HEAD_W = 0, 16, 48, 80, 96   # 16|32|32|16

# lane layout of the single (B, Q, 128) output slab
OFF_HS, OFF_LOGITS, OFF_PROB, OFF_BOX, OFF_REL, SLAB = 0, 32, 48, 64, 80, 128

assert K1 <= 16 and REL_INPUT_DIM <= 16 and S <= NUM_QUERIES and HIDDEN == 32


# ----------------------------------------------------------------------------
# Single fused Pallas kernel: folded backbone+proj -> cross-attn -> heads
# ----------------------------------------------------------------------------
def _fused_detr_kernel(patches_ref, wtot_ref, btot_ref, query_ref, pos_ref,
                       headw_ref, headb_ref, out_ref):
    scale = 1.0 / math.sqrt(HIDDEN)

    # ---- backbone stub + input_proj + rel_input_proj, folded into ONE matmul
    # TODO(synk): the real ResNet-101-C5 backbone is an external module; it is
    # stubbed with a stride-32 patchify + linear, exactly folded (affine chain)
    # with the two 1x1-conv projections into a single bf16 weight.
    proj = jnp.dot(patches_ref[...], wtot_ref[...],
                   preferred_element_type=jnp.float32) + btot_ref[...]  # (B*S, 48)

    q = query_ref[...]                       # (Q, d) bf16
    head_w = headw_ref[...]                  # (d, 96) bf16
    head_b = headb_ref[...]                  # (1, 96) f32

    for b in range(B):                       # B is tiny; unrolled at trace time
        memory = proj[b * S:(b + 1) * S, :HIDDEN]        # (S, d)  f32
        rel = proj[b * S:(b + 1) * S, HIDDEN:]           # (S, 16) f32

        # ---- transformer stub: single cross-attention decoder layer --------
        # TODO(synk): the full DETR Transformer (6-layer encoder/decoder with
        # self-attention, FFN, LayerNorm, out-proj) is an external module;
        # only its core cross-attention hot path is implemented here.
        # TODO(synk): key padding mask omitted — identically False for
        # same-size images (real NestedTensor padding would need a mask).
        k = (memory + pos_ref[b]).astype(jnp.bfloat16)   # keys + pos enc
        scores = jax.lax.dot_general(
            q, k, (((1,), (1,)), ((), ())),
            preferred_element_type=jnp.float32) * scale  # (Q, S)
        m = jnp.max(scores, axis=-1, keepdims=True)
        e = jnp.exp(scores - m)
        attn = e * pl.reciprocal(jnp.sum(e, axis=-1, keepdims=True), approx=True)
        hs = jnp.dot(attn.astype(jnp.bfloat16), memory.astype(jnp.bfloat16),
                     preferred_element_type=jnp.float32)  # (Q, d) f32
        hs_bf = hs.astype(jnp.bfloat16)

        # ---- class_embed fused with bbox MLP layer 1 (shared hs input) ------
        a = jnp.dot(hs_bf, head_w[:, HW_CLS:HW_B2],
                    preferred_element_type=jnp.float32) + head_b[:, HW_CLS:HW_B2]
        logits = a[:, 0:K1]                                       # (Q, K+1)
        h1 = jnp.maximum(a[:, HW_B1:HW_B2], 0.0)
        h2 = jnp.maximum(
            jnp.dot(h1.astype(jnp.bfloat16), head_w[:, HW_B2:HW_B3],
                    preferred_element_type=jnp.float32) + head_b[:, HW_B2:HW_B3],
            0.0)
        boxes16 = jax.nn.sigmoid(
            jnp.dot(h2.astype(jnp.bfloat16), head_w[:, HW_B3:HEAD_W],
                    preferred_element_type=jnp.float32) + head_b[:, HW_B3:HEAD_W])

        # ---- PostProcess softmax (exact divide: user-facing scores) ---------
        lm = jnp.max(logits, axis=-1, keepdims=True)
        le = jnp.exp(logits - lm)
        prob = le / jnp.sum(le, axis=-1, keepdims=True)            # (Q, K+1)

        # ---- single lane-dense (Q, 128) output slab --------------------------
        #  [0:32) hs | [32:48) logits | [48:64) prob | [64:80) boxes(cxcywh) |
        #  [80:96) rel features (rows 0..S-1) | [96:128) pad
        zq = lambda w: jnp.zeros((NUM_QUERIES, w), jnp.float32)
        slab = jnp.concatenate([
            hs,                                                    # 32 lanes
            a[:, 0:16],                                            # logits + pad
            jnp.concatenate([prob, zq(16 - K1)], axis=1),          # prob + pad
            boxes16,                                               # boxes + pad
            jnp.concatenate(                                       # rel + row pad
                [rel, jnp.zeros((NUM_QUERIES - S, REL_INPUT_DIM), jnp.float32)],
                axis=0),
            zq(SLAB - 96),                                         # lane pad
        ], axis=1)
        out_ref[b] = slab


def fused_detr_call(patches_bf16, p):
    """One single-step pallas_call for the whole hot path (whole batch)."""
    full = lambda *shape: pl.BlockSpec(shape, lambda i: (0,) * len(shape))
    return pl.pallas_call(
        _fused_detr_kernel,
        out_shape=jax.ShapeDtypeStruct((B, NUM_QUERIES, SLAB), jnp.float32),
        grid=(1,),
        in_specs=[
            full(B * S, K_IN),               # patches (bf16, normalized)
            full(K_IN, PROJ_OUT),            # folded backbone+proj weight (bf16)
            full(1, PROJ_OUT),               # folded bias (f32)
            full(NUM_QUERIES, HIDDEN),       # query_embed (bf16)
            full(B, S, HIDDEN),              # constant sine position embedding
            full(HIDDEN, HEAD_W),            # packed head weights (bf16)
            full(1, HEAD_W),                 # packed head biases (f32)
        ],
        out_specs=full(B, NUM_QUERIES, SLAB),
        compiler_params=pltpu.CompilerParams(dimension_semantics=("arbitrary",)),
    )(patches_bf16, p["w_total"], p["b_total"], p["query_embed"],
      p["pos_seq"], p["head_w"], p["head_b"])


# ----------------------------------------------------------------------------
# JAX glue: position encoding, box conversion, backbone patchify
# ----------------------------------------------------------------------------
def sine_position_embedding(mask_bool, num_pos_feats, temperature=10000.0):
    """DETR sine position embedding (normalize=True). mask: (B,Hs,Ws), True=pad."""
    not_mask = (~mask_bool).astype(jnp.float32)
    y_embed = jnp.cumsum(not_mask, axis=1)
    x_embed = jnp.cumsum(not_mask, axis=2)
    eps, scale = 1e-6, 2.0 * math.pi
    y_embed = y_embed / (y_embed[:, -1:, :] + eps) * scale
    x_embed = x_embed / (x_embed[:, :, -1:] + eps) * scale
    dim_t = jnp.arange(num_pos_feats, dtype=jnp.float32)
    dim_t = temperature ** (2.0 * jnp.floor(dim_t / 2.0) / num_pos_feats)
    pos_x = x_embed[:, :, :, None] / dim_t
    pos_y = y_embed[:, :, :, None] / dim_t
    pos_x = jnp.stack([jnp.sin(pos_x[:, :, :, 0::2]),
                       jnp.cos(pos_x[:, :, :, 1::2])], axis=4)
    pos_y = jnp.stack([jnp.sin(pos_y[:, :, :, 0::2]),
                       jnp.cos(pos_y[:, :, :, 1::2])], axis=4)
    sh = pos_x.shape
    pos_x = pos_x.reshape(sh[0], sh[1], sh[2], -1)
    pos_y = pos_y.reshape(sh[0], sh[1], sh[2], -1)
    pos = jnp.concatenate([pos_y, pos_x], axis=3)          # (B,Hs,Ws,2*npf)
    return jnp.transpose(pos, (0, 3, 1, 2))                # (B, hidden, Hs, Ws)


def box_cxcywh_to_xyxy(boxes):
    cx, cy, w, h = jnp.split(boxes, 4, axis=-1)
    return jnp.concatenate(
        [cx - 0.5 * w, cy - 0.5 * h, cx + 0.5 * w, cy + 0.5 * h], axis=-1)


def patchify(images_nchw, patch):
    b, c, h, w = images_nchw.shape
    hp, wp = h // patch, w // patch
    x = images_nchw.reshape(b, c, hp, patch, wp, patch)
    x = jnp.transpose(x, (0, 2, 4, 1, 3, 5))                # (B,hp,wp,C,p,p)
    return x.reshape(b, hp * wp, c * patch * patch)         # flat order (c, ph, pw)


# ----------------------------------------------------------------------------
# Parameters: backbone+proj folded, heads packed, pos embedding precomputed
# ----------------------------------------------------------------------------
def init_params(key):
    ks = jax.random.split(key, 16)
    nrm = lambda k, shape, s=0.02: (s * jax.random.normal(k, shape)).astype(jnp.float32)

    # backbone stub: patchify(32x32) -> linear to C_BACKBONE
    bb_w = nrm(ks[0], (K_IN, C_BACKBONE))
    bb_b = nrm(ks[1], (C_BACKBONE,))
    # input_proj: Conv2d(C_BACKBONE, HIDDEN, 1); rel_input_proj: Conv2d(C_BACKBONE, REL, 1)
    inproj_w = nrm(ks[2], (C_BACKBONE, HIDDEN))
    inproj_b = nrm(ks[3], (HIDDEN,))
    rel_w = nrm(ks[13], (C_BACKBONE, REL_INPUT_DIM))
    rel_b = nrm(ks[14], (REL_INPUT_DIM,))

    # Exact affine fold: res5 is only consumed by the two 1x1 projections.
    inrel_w = jnp.concatenate([inproj_w, rel_w], axis=1)        # (Cb, 48)
    inrel_b = jnp.concatenate([inproj_b, rel_b], axis=0)        # (48,)
    w_total = bb_w @ inrel_w                                     # (K_IN, 48)
    b_total = bb_b @ inrel_w + inrel_b                           # (48,)

    # class_embed + bbox MLP packed into one weight slab (shared HIDDEN input)
    cls_w = nrm(ks[5], (HIDDEN, K1));      cls_b = nrm(ks[6], (K1,))
    bw1 = nrm(ks[7], (HIDDEN, HIDDEN));    bb1 = nrm(ks[8], (HIDDEN,))
    bw2 = nrm(ks[9], (HIDDEN, HIDDEN));    bb2 = nrm(ks[10], (HIDDEN,))
    bw3 = nrm(ks[11], (HIDDEN, 4));        bb3 = nrm(ks[12], (4,))
    padc = lambda w, n: jnp.pad(w, ((0, 0), (0, n - w.shape[1])))
    padv = lambda v, n: jnp.pad(v, (0, n - v.shape[0]))
    head_w = jnp.concatenate([padc(cls_w, 16), bw1, bw2, padc(bw3, 16)], axis=1)
    head_b = jnp.concatenate([padv(cls_b, 16), bb1, bb2, padv(bb3, 16)], axis=0)

    # Position embedding depends only on the (constant, all-valid) mask shape:
    # precompute once here instead of per forward call.
    mask = jnp.zeros((B, HS, WS), dtype=bool)
    pos = sine_position_embedding(mask, HIDDEN // 2)             # (B, HIDDEN, Hs, Ws)
    pos_seq = jnp.transpose(pos, (0, 2, 3, 1)).reshape(B, S, HIDDEN)

    return {
        "pixel_mean": jnp.array([103.53, 116.28, 123.675], jnp.float32),
        "pixel_std": jnp.array([57.375, 57.12, 58.395], jnp.float32),
        "w_total": w_total.astype(jnp.bfloat16),
        "b_total": b_total.reshape(1, PROJ_OUT),
        "query_embed": nrm(ks[4], (NUM_QUERIES, HIDDEN), 1.0).astype(jnp.bfloat16),
        "pos_seq": pos_seq,
        "head_w": head_w.astype(jnp.bfloat16),
        "head_b": head_b.reshape(1, HEAD_W),
    }


# ----------------------------------------------------------------------------
# Forward (inference path of TwoStageDETRVRD.forward)
# ----------------------------------------------------------------------------
@jax.jit
def two_stage_detr_vrd_forward(images, params):
    # ---- preprocess_image: exact f32 pixel normalization, then patchify ------
    mean = params["pixel_mean"].reshape(1, C_IMG, 1, 1)
    std = params["pixel_std"].reshape(1, C_IMG, 1, 1)
    x = (images - mean) / std
    patches = patchify(x, STRIDE).reshape(B * S, K_IN).astype(jnp.bfloat16)

    # ---- single fused Pallas kernel -> one lane-dense output slab ------------
    slab = fused_detr_call(patches, params)                      # (B, Q, 128)

    hs = slab[:, :, OFF_HS:OFF_HS + HIDDEN]                      # (B, Q, d)
    pred_logits = slab[:, :, OFF_LOGITS:OFF_LOGITS + K1]         # (B, Q, K+1)
    prob = slab[:, :, OFF_PROB:OFF_PROB + K1]                    # softmax(logits)
    pred_boxes = slab[:, :, OFF_BOX:OFF_BOX + 4]                 # cxcywh, sigmoid
    rel_flat = slab[:, 0:S, OFF_REL:OFF_REL + REL_INPUT_DIM]     # (B, S, REL)

    # Per-layer aux outputs: the transformer stub has one effective layer, so
    # the (L, B, Q, ·) stacks are broadcasts (aux losses are training-only).
    ent_hs = jnp.broadcast_to(hs, (NUM_DEC_LAYERS, B, NUM_QUERIES, HIDDEN))
    ent_features = ent_hs[-1]                                    # (B, Q, HIDDEN)

    # ---- PostProcess: scores / labels / box rescale ---------------------------
    scores = jnp.max(prob[..., :-1], axis=-1)
    labels = jnp.argmax(prob[..., :-1], axis=-1)
    boxes_xyxy = box_cxcywh_to_xyxy(pred_boxes)
    target_sizes = jnp.tile(jnp.array([[float(H), float(W)]], jnp.float32), (B, 1))
    img_h, img_w = target_sizes[:, 0], target_sizes[:, 1]
    scale_fct = jnp.stack([img_w, img_h, img_w, img_h], axis=1)[:, None, :]
    boxes_scaled = boxes_xyxy * scale_fct
    pred_score_dist = prob[..., :-1]                             # per-query class dist

    # ---- rel_input_proj output: slab slice -> NCHW ----------------------------
    rel_features = jnp.transpose(
        rel_flat.reshape(B, HS, WS, REL_INPUT_DIM), (0, 3, 1, 2))  # (B, REL, Hs, Ws)

    # TODO(synk): relation_head, SetCriterion / HungarianMatcher (training
    # losses) and Instances bookkeeping are external modules with no Pallas
    # equivalent; inference-path tensors are returned directly.
    return {
        "pred_logits": pred_logits,
        "pred_boxes": pred_boxes,
        "scores": scores,
        "pred_classes": labels,
        "boxes": boxes_scaled,
        "pred_score_dist": pred_score_dist,
        "entity_features": ent_features,
        "rel_features": rel_features,
    }


# ----------------------------------------------------------------------------
if __name__ == "__main__":
    key = jax.random.PRNGKey(0)
    k_img, k_par = jax.random.split(key)
    # synthetic batched images, NCHW, values in [0, 255)
    images = jax.random.uniform(k_img, (B, C_IMG, H, W), jnp.float32) * 255.0
    params = init_params(k_par)

    out = two_stage_detr_vrd_forward(images, params)
    jax.block_until_ready(out)

    assert out["pred_logits"].shape == (B, NUM_QUERIES, NUM_CLASSES + 1)
    assert out["pred_boxes"].shape == (B, NUM_QUERIES, 4)
    assert out["boxes"].shape == (B, NUM_QUERIES, 4)
    assert out["pred_score_dist"].shape == (B, NUM_QUERIES, NUM_CLASSES)
    assert out["entity_features"].shape == (B, NUM_QUERIES, HIDDEN)
    assert out["rel_features"].shape == (B, REL_INPUT_DIM, HS, WS)
    assert bool(jnp.all(jnp.isfinite(out["boxes"])))
    assert bool(jnp.all(jnp.isfinite(out["pred_score_dist"])))
    print("KERNEL_OK")
</pallas_src>

<mosaic_0001>
module attributes {stable_mosaic.version = 11 : i64} {
  func.func @_fused_detr_kernel(%arg0: i32, %arg1: memref<8x3072xbf16, #tpu.memory_space<vmem>>, %arg2: memref<3072x48xbf16, #tpu.memory_space<vmem>>, %arg3: memref<1x48xf32, #tpu.memory_space<vmem>>, %arg4: memref<8x32xbf16, #tpu.memory_space<vmem>>, %arg5: memref<2x4x32xf32, #tpu.memory_space<vmem>>, %arg6: memref<32x96xbf16, #tpu.memory_space<vmem>>, %arg7: memref<1x96xf32, #tpu.memory_space<vmem>>, %arg8: memref<2x8x128xf32, #tpu.memory_space<vmem>>) attributes {dimension_semantics = [#tpu.dimension_semantics<arbitrary>], iteration_bounds = array<i64: 1>, scalar_prefetch = 0 : i64, scratch_operands = 0 : i64, tpu.core_type = #tpu.core_type<tc>, window_params = [{pipeline_mode = #tpu.pipeline_mode<synchronous>, transform_indices = @transform_0, window_bounds = array<i64: 8, 3072>}, {pipeline_mode = #tpu.pipeline_mode<synchronous>, transform_indices = @transform_1, window_bounds = array<i64: 3072, 48>}, {pipeline_mode = #tpu.pipeline_mode<synchronous>, transform_indices = @transform_2, window_bounds = array<i64: 1, 48>}, {pipeline_mode = #tpu.pipeline_mode<synchronous>, transform_indices = @transform_3, window_bounds = array<i64: 8, 32>}, {pipeline_mode = #tpu.pipeline_mode<synchronous>, transform_indices = @transform_4, window_bounds = array<i64: 2, 4, 32>}, {pipeline_mode = #tpu.pipeline_mode<synchronous>, transform_indices = @transform_5, window_bounds = array<i64: 32, 96>}, {pipeline_mode = #tpu.pipeline_mode<synchronous>, transform_indices = @transform_6, window_bounds = array<i64: 1, 96>}, {pipeline_mode = #tpu.pipeline_mode<synchronous>, transform_indices = @transform_7, window_bounds = array<i64: 2, 8, 128>}]} {
    %c0 = arith.constant 0 : index
    %c0_0 = arith.constant 0 : index
    %0 = vector.load %arg1[%c0, %c0_0] : memref<8x3072xbf16, #tpu.memory_space<vmem>>, vector<8x3072xbf16>
    %c0_1 = arith.constant 0 : index
    %c0_2 = arith.constant 0 : index
    %1 = vector.load %arg2[%c0_1, %c0_2] : memref<3072x48xbf16, #tpu.memory_space<vmem>>, vector<3072x48xbf16>
    %cst = arith.constant dense<0.000000e+00> : vector<8x48xf32>
    %2 = tpu.matmul %0, %1, %cst {dimension_numbers = #tpu.dot_dimension_numbers<[1], [0], [0], [1], [0, 0, 1, 1], [], []>} : vector<8x3072xbf16>, vector<3072x48xbf16>, vector<8x48xf32> -> vector<8x48xf32>
    %c0_3 = arith.constant 0 : index
    %c0_4 = arith.constant 0 : index
    %3 = vector.load %arg3[%c0_3, %c0_4] : memref<1x48xf32, #tpu.memory_space<vmem>>, vector<1x48xf32>
    %4 = vector.broadcast %3 : vector<1x48xf32> to vector<8x48xf32>
    %5 = arith.addf %2, %4 : vector<8x48xf32>
    %c0_5 = arith.constant 0 : index
    %c0_6 = arith.constant 0 : index
    %6 = vector.load %arg4[%c0_5, %c0_6] : memref<8x32xbf16, #tpu.memory_space<vmem>>, vector<8x32xbf16>
    %c0_7 = arith.constant 0 : index
    %c0_8 = arith.constant 0 : index
    %7 = vector.load %arg6[%c0_7, %c0_8] : memref<32x96xbf16, #tpu.memory_space<vmem>>, vector<32x96xbf16>
    %c0_9 = arith.constant 0 : index
    %c0_10 = arith.constant 0 : index
    %8 = vector.load %arg7[%c0_9, %c0_10] : memref<1x96xf32, #tpu.memory_space<vmem>>, vector<1x96xf32>
    %9 = vector.extract_strided_slice %5 {offsets = [0, 0], sizes = [4, 32], strides = [1, 1]} : vector<8x48xf32> to vector<4x32xf32>
    %10 = vector.extract_strided_slice %5 {offsets = [0, 32], sizes = [4, 16], strides = [1, 1]} : vector<8x48xf32> to vector<4x16xf32>
    %c0_11 = arith.constant 0 : index
    %c0_12 = arith.constant 0 : index
    %c0_13 = arith.constant 0 : index
    %11 = vector.load %arg5[%c0_11, %c0_12, %c0_13] : memref<2x4x32xf32, #tpu.memory_space<vmem>>, vector<1x4x32xf32>
    %12 = vector.shape_cast %11 : vector<1x4x32xf32> to vector<4x32xf32>
    %13 = arith.addf %9, %12 : vector<4x32xf32>
    %14 = arith.truncf %13 : vector<4x32xf32> to vector<4x32xbf16>
    %cst_14 = arith.constant dense<0.000000e+00> : vector<8x4xf32>
    %15 = tpu.matmul %6, %14, %cst_14 {dimension_numbers = #tpu.dot_dimension_numbers<[1], [1], [0], [0], [0, 0, 1, 0], [], []>} : vector<8x32xbf16>, vector<4x32xbf16>, vector<8x4xf32> -> vector<8x4xf32>
    %cst_15 = arith.constant 0.176776692 : f32
    %16 = vector.broadcast %cst_15 : f32 to vector<8x4xf32>
    %17 = arith.mulf %15, %16 : vector<8x4xf32>
    %cst_16 = arith.constant dense<0xFF800000> : vector<8xf32>
    %18 = vector.multi_reduction <maximumf>, %17, %cst_16 [1] : vector<8x4xf32> to vector<8xf32>
    %19 = vector.shape_cast %18 : vector<8xf32> to vector<8x1xf32>
    %20 = vector.broadcast %19 : vector<8x1xf32> to vector<8x4xf32>
    %21 = arith.subf %17, %20 : vector<8x4xf32>
    %22 = math.exp %21 : vector<8x4xf32>
    %cst_17 = arith.constant dense<0.000000e+00> : vector<8xf32>
    %23 = vector.multi_reduction <add>, %22, %cst_17 [1] : vector<8x4xf32> to vector<8xf32>
    %24 = vector.shape_cast %23 : vector<8xf32> to vector<8x1xf32>
    %25 = tpu.reciprocal %24 {approx = true} : vector<8x1xf32> -> vector<8x1xf32>
    %26 = vector.broadcast %25 : vector<8x1xf32> to vector<8x4xf32>
    %27 = arith.mulf %22, %26 : vector<8x4xf32>
    %28 = arith.truncf %27 : vector<8x4xf32> to vector<8x4xbf16>
    %29 = arith.truncf %9 : vector<4x32xf32> to vector<4x32xbf16>
    %cst_18 = arith.constant dense<0.000000e+00> : vector<8x32xf32>
    %30 = tpu.matmul %28, %29, %cst_18 {dimension_numbers = #tpu.dot_dimension_numbers<[1], [0], [0], [1], [0, 0, 1, 1], [], []>} : vector<8x4xbf16>, vector<4x32xbf16>, vector<8x32xf32> -> vector<8x32xf32>
    %31 = arith.truncf %30 : vector<8x32xf32> to vector<8x32xbf16>
    %32 = vector.extract_strided_slice %7 {offsets = [0, 0], sizes = [32, 48], strides = [1, 1]} : vector<32x96xbf16> to vector<32x48xbf16>
    %cst_19 = arith.constant dense<0.000000e+00> : vector<8x48xf32>
    %33 = tpu.matmul %31, %32, %cst_19 {dimension_numbers = #tpu.dot_dimension_numbers<[1], [0], [0], [1], [0, 0, 1, 1], [], []>} : vector<8x32xbf16>, vector<32x48xbf16>, vector<8x48xf32> -> vector<8x48xf32>
    %34 = vector.extract_strided_slice %8 {offsets = [0, 0], sizes = [1, 48], strides = [1, 1]} : vector<1x96xf32> to vector<1x48xf32>
    %35 = vector.broadcast %34 : vector<1x48xf32> to vector<8x48xf32>
    %36 = arith.addf %33, %35 : vector<8x48xf32>
    %37 = vector.extract_strided_slice %36 {offsets = [0, 0], sizes = [8, 11], strides = [1, 1]} : vector<8x48xf32> to vector<8x11xf32>
    %38 = vector.extract_strided_slice %36 {offsets = [0, 16], sizes = [8, 32], strides = [1, 1]} : vector<8x48xf32> to vector<8x32xf32>
    %cst_20 = arith.constant 0.000000e+00 : f32
    %39 = vector.broadcast %cst_20 : f32 to vector<8x32xf32>
    %40 = arith.maximumf %38, %39 : vector<8x32xf32>
    %41 = arith.truncf %40 : vector<8x32xf32> to vector<8x32xbf16>
    %42 = vector.extract_strided_slice %7 {offsets = [0, 48], sizes = [32, 32], strides = [1, 1]} : vector<32x96xbf16> to vector<32x32xbf16>
    %cst_21 = arith.constant dense<0.000000e+00> : vector<8x32xf32>
    %43 = tpu.matmul %41, %42, %cst_21 {dimension_numbers = #tpu.dot_dimension_numbers<[1], [0], [0], [1], [0, 0, 1, 1], [], []>} : vector<8x32xbf16>, vector<32x32xbf16>, vector<8x32xf32> -> vector<8x32xf32>
    %44 = vector.extract_strided_slice %8 {offsets = [0, 48], sizes = [1, 32], strides = [1, 1]} : vector<1x96xf32> to vector<1x32xf32>
    %45 = vector.broadcast %44 : vector<1x32xf32> to vector<8x32xf32>
    %46 = arith.addf %43, %45 : vector<8x32xf32>
    %cst_22 = arith.constant 0.000000e+00 : f32
    %47 = vector.broadcast %cst_22 : f32 to vector<8x32xf32>
    %48 = arith.maximumf %46, %47 : vector<8x32xf32>
    %49 = arith.truncf %48 : vector<8x32xf32> to vector<8x32xbf16>
    %50 = vector.extract_strided_slice %7 {offsets = [0, 80], sizes = [32, 16], strides = [1, 1]} : vector<32x96xbf16> to vector<32x16xbf16>
    %cst_23 = arith.constant dense<0.000000e+00> : vector<8x16xf32>
    %51 = tpu.matmul %49, %50, %cst_23 {dimension_numbers = #tpu.dot_dimension_numbers<[1], [0], [0], [1], [0, 0, 1, 1], [], []>} : vector<8x32xbf16>, vector<32x16xbf16>, vector<8x16xf32> -> vector<8x16xf32>
    %52 = vector.extract_strided_slice %8 {offsets = [0, 80], sizes = [1, 16], strides = [1, 1]} : vector<1x96xf32> to vector<1x16xf32>
    %53 = vector.broadcast %52 : vector<1x16xf32> to vector<8x16xf32>
    %54 = arith.addf %51, %53 : vector<8x16xf32>
    %55 = arith.negf %54 : vector<8x16xf32>
    %56 = math.exp %55 : vector<8x16xf32>
    %cst_24 = arith.constant 1.000000e+00 : f32
    %57 = vector.broadcast %cst_24 : f32 to vector<8x16xf32>
    %58 = arith.addf %57, %56 : vector<8x16xf32>
    %59 = arith.divf %57, %58 : vector<8x16xf32>
    %cst_25 = arith.constant dense<0xFF800000> : vector<8xf32>
    %60 = vector.multi_reduction <maximumf>, %37, %cst_25 [1] : vector<8x11xf32> to vector<8xf32>
    %61 = vector.shape_cast %60 : vector<8xf32> to vector<8x1xf32>
    %62 = vector.broadcast %61 : vector<8x1xf32> to vector<8x11xf32>
    %63 = arith.subf %37, %62 : vector<8x11xf32>
    %64 = math.exp %63 : vector<8x11xf32>
    %cst_26 = arith.constant dense<0.000000e+00> : vector<8xf32>
    %65 = vector.multi_reduction <add>, %64, %cst_26 [1] : vector<8x11xf32> to vector<8xf32>
    %66 = vector.shape_cast %65 : vector<8xf32> to vector<8x1xf32>
    %67 = vector.broadcast %66 : vector<8x1xf32> to vector<8x11xf32>
    %68 = arith.divf %64, %67 : vector<8x11xf32>
    %69 = vector.extract_strided_slice %36 {offsets = [0, 0], sizes = [8, 16], strides = [1, 1]} : vector<8x48xf32> to vector<8x16xf32>
    %cst_27 = arith.constant 0.000000e+00 : f32
    %70 = vector.broadcast %cst_27 : f32 to vector<8x5xf32>
    %71 = tpu.concatenate %68, %70 in 1 : vector<8x11xf32>, vector<8x5xf32> -> vector<8x16xf32>
    %cst_28 = arith.constant 0.000000e+00 : f32
    %72 = vector.broadcast %cst_28 : f32 to vector<4x16xf32>
    %73 = tpu.concatenate %10, %72 in 0 : vector<4x16xf32>, vector<4x16xf32> -> vector<8x16xf32>
    %cst_29 = arith.constant 0.000000e+00 : f32
    %74 = vector.broadcast %cst_29 : f32 to vector<8x32xf32>
    %75 = tpu.concatenate %30, %69, %71, %59, %73, %74 in 1 : vector<8x32xf32>, vector<8x16xf32>, vector<8x16xf32>, vector<8x16xf32>, vector<8x16xf32>, vector<8x32xf32> -> vector<8x128xf32>
    %c0_30 = arith.constant 0 : index
    %c0_31 = arith.constant 0 : index
    %c0_32 = arith.constant 0 : index
    %76 = vector.load %arg8[%c0_30, %c0_31, %c0_32] : memref<2x8x128xf32, #tpu.memory_space<vmem>>, vector<1x8x128xf32>
    %77 = vector.shape_cast %76 : vector<1x8x128xf32> to vector<8x128xf32>
    %78 = vector.shape_cast %75 : vector<8x128xf32> to vector<1x8x128xf32>
    tpu.vector_store %arg8[%c0_30, %c0_31, %c0_32], %78 {strides = array<i32>} : memref<2x8x128xf32, #tpu.memory_space<vmem>>, vector<1x8x128xf32>,
    %79 = vector.extract_strided_slice %5 {offsets = [4, 0], sizes = [4, 32], strides = [1, 1]} : vector<8x48xf32> to vector<4x32xf32>
    %80 = vector.extract_strided_slice %5 {offsets = [4, 32], sizes = [4, 16], strides = [1, 1]} : vector<8x48xf32> to vector<4x16xf32>
    %c1 = arith.constant 1 : index
    %c0_33 = arith.constant 0 : index
    %c0_34 = arith.constant 0 : index
    %81 = vector.load %arg5[%c1, %c0_33, %c0_34] : memref<2x4x32xf32, #tpu.memory_space<vmem>>, vector<1x4x32xf32>
    %82 = vector.shape_cast %81 : vector<1x4x32xf32> to vector<4x32xf32>
    %83 = arith.addf %79, %82 : vector<4x32xf32>
    %84 = arith.truncf %83 : vector<4x32xf32> to vector<4x32xbf16>
    %cst_35 = arith.constant dense<0.000000e+00> : vector<8x4xf32>
    %85 = tpu.matmul %6, %84, %cst_35 {dimension_numbers = #tpu.dot_dimension_numbers<[1], [1], [0], [0], [0, 0, 1, 0], [], []>} : vector<8x32xbf16>, vector<4x32xbf16>, vector<8x4xf32> -> vector<8x4xf32>
    %cst_36 = arith.constant 0.176776692 : f32
    %86 = vector.broadcast %cst_36 : f32 to vector<8x4xf32>
    %87 = arith.mulf %85, %86 : vector<8x4xf32>
    %cst_37 = arith.constant dense<0xFF800000> : vector<8xf32>
    %88 = vector.multi_reduction <maximumf>, %87, %cst_37 [1] : vector<8x4xf32> to vector<8xf32>
    %89 = vector.shape_cast %88 : vector<8xf32> to vector<8x1xf32>
    %90 = vector.broadcast %89 : vector<8x1xf32> to vector<8x4xf32>
    %91 = arith.subf %87, %90 : vector<8x4xf32>
    %92 = math.exp %91 : vector<8x4xf32>
    %cst_38 = arith.constant dense<0.000000e+00> : vector<8xf32>
    %93 = vector.multi_reduction <add>, %92, %cst_38 [1] : vector<8x4xf32> to vector<8xf32>
    %94 = vector.shape_cast %93 : vector<8xf32> to vector<8x1xf32>
    %95 = tpu.reciprocal %94 {approx = true} : vector<8x1xf32> -> vector<8x1xf32>
    %96 = vector.broadcast %95 : vector<8x1xf32> to vector<8x4xf32>
    %97 = arith.mulf %92, %96 : vector<8x4xf32>
    %98 = arith.truncf %97 : vector<8x4xf32> to vector<8x4xbf16>
    %99 = arith.truncf %79 : vector<4x32xf32> to vector<4x32xbf16>
    %cst_39 = arith.constant dense<0.000000e+00> : vector<8x32xf32>
    %100 = tpu.matmul %98, %99, %cst_39 {dimension_numbers = #tpu.dot_dimension_numbers<[1], [0], [0], [1], [0, 0, 1, 1], [], []>} : vector<8x4xbf16>, vector<4x32xbf16>, vector<8x32xf32> -> vector<8x32xf32>
    %101 = arith.truncf %100 : vector<8x32xf32> to vector<8x32xbf16>
    %102 = vector.extract_strided_slice %7 {offsets = [0, 0], sizes = [32, 48], strides = [1, 1]} : vector<32x96xbf16> to vector<32x48xbf16>
    %cst_40 = arith.constant dense<0.000000e+00> : vector<8x48xf32>
    %103 = tpu.matmul %101, %102, %cst_40 {dimension_numbers = #tpu.dot_dimension_numbers<[1], [0], [0], [1], [0, 0, 1, 1], [], []>} : vector<8x32xbf16>, vector<32x48xbf16>, vector<8x48xf32> -> vector<8x48xf32>
    %104 = vector.extract_strided_slice %8 {offsets = [0, 0], sizes = [1, 48], strides = [1, 1]} : vector<1x96xf32> to vector<1x48xf32>
    %105 = vector.broadcast %104 : vector<1x48xf32> to vector<8x48xf32>
    %106 = arith.addf %103, %105 : vector<8x48xf32>
    %107 = vector.extract_strided_slice %106 {offsets = [0, 0], sizes = [8, 11], strides = [1, 1]} : vector<8x48xf32> to vector<8x11xf32>
    %108 = vector.extract_strided_slice %106 {offsets = [0, 16], sizes = [8, 32], strides = [1, 1]} : vector<8x48xf32> to vector<8x32xf32>
    %cst_41 = arith.constant 0.000000e+00 : f32
    %109 = vector.broadcast %cst_41 : f32 to vector<8x32xf32>
    %110 = arith.maximumf %108, %109 : vector<8x32xf32>
    %111 = arith.truncf %110 : vector<8x32xf32> to vector<8x32xbf16>
    %112 = vector.extract_strided_slice %7 {offsets = [0, 48], sizes = [32, 32], strides = [1, 1]} : vector<32x96xbf16> to vector<32x32xbf16>
    %cst_42 = arith.constant dense<0.000000e+00> : vector<8x32xf32>
    %113 = tpu.matmul %111, %112, %cst_42 {dimension_numbers = #tpu.dot_dimension_numbers<[1], [0], [0], [1], [0, 0, 1, 1], [], []>} : vector<8x32xbf16>, vector<32x32xbf16>, vector<8x32xf32> -> vector<8x32xf32>
    %114 = vector.extract_strided_slice %8 {offsets = [0, 48], sizes = [1, 32], strides = [1, 1]} : vector<1x96xf32> to vector<1x32xf32>
    %115 = vector.broadcast %114 : vector<1x32xf32> to vector<8x32xf32>
    %116 = arith.addf %113, %115 : vector<8x32xf32>
    %cst_43 = arith.constant 0.000000e+00 : f32
    %117 = vector.broadcast %cst_43 : f32 to vector<8x32xf32>
    %118 = arith.maximumf %116, %117 : vector<8x32xf32>
    %119 = arith.truncf %118 : vector<8x32xf32> to vector<8x32xbf16>
    %120 = vector.extract_strided_slice %7 {offsets = [0, 80], sizes = [32, 16], strides = [1, 1]} : vector<32x96xbf16> to vector<32x16xbf16>
    %cst_44 = arith.constant dense<0.000000e+00> : vector<8x16xf32>
    %121 = tpu.matmul %119, %120, %cst_44 {dimension_numbers = #tpu.dot_dimension_numbers<[1], [0], [0], [1], [0, 0, 1, 1], [], []>} : vector<8x32xbf16>, vector<32x16xbf16>, vector<8x16xf32> -> vector<8x16xf32>
    %122 = vector.extract_strided_slice %8 {offsets = [0, 80], sizes = [1, 16], strides = [1, 1]} : vector<1x96xf32> to vector<1x16xf32>
    %123 = vector.broadcast %122 : vector<1x16xf32> to vector<8x16xf32>
    %124 = arith.addf %121, %123 : vector<8x16xf32>
    %125 = arith.negf %124 : vector<8x16xf32>
    %126 = math.exp %125 : vector<8x16xf32>
    %cst_45 = arith.constant 1.000000e+00 : f32
    %127 = vector.broadcast %cst_45 : f32 to vector<8x16xf32>
    %128 = arith.addf %127, %126 : vector<8x16xf32>
    %129 = arith.divf %127, %128 : vector<8x16xf32>
    %cst_46 = arith.constant dense<0xFF800000> : vector<8xf32>
    %130 = vector.multi_reduction <maximumf>, %107, %cst_46 [1] : vector<8x11xf32> to vector<8xf32>
    %131 = vector.shape_cast %130 : vector<8xf32> to vector<8x1xf32>
    %132 = vector.broadcast %131 : vector<8x1xf32> to vector<8x11xf32>
    %133 = arith.subf %107, %132 : vector<8x11xf32>
    %134 = math.exp %133 : vector<8x11xf32>
    %cst_47 = arith.constant dense<0.000000e+00> : vector<8xf32>
    %135 = vector.multi_reduction <add>, %134, %cst_47 [1] : vector<8x11xf32> to vector<8xf32>
    %136 = vector.shape_cast %135 : vector<8xf32> to vector<8x1xf32>
    %137 = vector.broadcast %136 : vector<8x1xf32> to vector<8x11xf32>
    %138 = arith.divf %134, %137 : vector<8x11xf32>
    %139 = vector.extract_strided_slice %106 {offsets = [0, 0], sizes = [8, 16], strides = [1, 1]} : vector<8x48xf32> to vector<8x16xf32>
    %cst_48 = arith.constant 0.000000e+00 : f32
    %140 = vector.broadcast %cst_48 : f32 to vector<8x5xf32>
    %141 = tpu.concatenate %138, %140 in 1 : vector<8x11xf32>, vector<8x5xf32> -> vector<8x16xf32>
    %cst_49 = arith.constant 0.000000e+00 : f32
    %142 = vector.broadcast %cst_49 : f32 to vector<4x16xf32>
    %143 = tpu.concatenate %80, %142 in 0 : vector<4x16xf32>, vector<4x16xf32> -> vector<8x16xf32>
    %cst_50 = arith.constant 0.000000e+00 : f32
    %144 = vector.broadcast %cst_50 : f32 to vector<8x32xf32>
    %145 = tpu.concatenate %100, %139, %141, %129, %143, %144 in 1 : vector<8x32xf32>, vector<8x16xf32>, vector<8x16xf32>, vector<8x16xf32>, vector<8x16xf32>, vector<8x32xf32> -> vector<8x128xf32>
    %c1_51 = arith.constant 1 : index
    %c0_52 = arith.constant 0 : index
    %c0_53 = arith.constant 0 : index
    %146 = vector.load %arg8[%c1_51, %c0_52, %c0_53] : memref<2x8x128xf32, #tpu.memory_space<vmem>>, vector<1x8x128xf32>
    %147 = vector.shape_cast %146 : vector<1x8x128xf32> to vector<8x128xf32>
    %148 = vector.shape_cast %145 : vector<8x128xf32> to vector<1x8x128xf32>
    tpu.vector_store %arg8[%c1_51, %c0_52, %c0_53], %148 {strides = array<i32>} : memref<2x8x128xf32, #tpu.memory_space<vmem>>, vector<1x8x128xf32>,
    return
  }
  func.func @transform_0(%arg0: i32) -> (i32, i32) {
    %c0_i32 = arith.constant 0 : i32
    %c0_i32_0 = arith.constant 0 : i32
    %c0_i32_1 = arith.constant 0 : i32
    return %c0_i32, %c0_i32_0 : i32, i32
  }
  func.func @transform_1(%arg0: i32) -> (i32, i32) {
    %c0_i32 = arith.constant 0 : i32
    %c0_i32_0 = arith.constant 0 : i32
    %c0_i32_1 = arith.constant 0 : i32
    return %c0_i32, %c0_i32_0 : i32, i32
  }
  func.func @transform_2(%arg0: i32) -> (i32, i32) {
    %c0_i32 = arith.constant 0 : i32
    %c0_i32_0 = arith.constant 0 : i32
    %c0_i32_1 = arith.constant 0 : i32
    return %c0_i32, %c0_i32_0 : i32, i32
  }
  func.func @transform_3(%arg0: i32) -> (i32, i32) {
    %c0_i32 = arith.constant 0 : i32
    %c0_i32_0 = arith.constant 0 : i32
    %c0_i32_1 = arith.constant 0 : i32
    return %c0_i32, %c0_i32_0 : i32, i32
  }
  func.func @transform_4(%arg0: i32) -> (i32, i32, i32) {
    %c0_i32 = arith.constant 0 : i32
    %c0_i32_0 = arith.constant 0 : i32
    %c0_i32_1 = arith.constant 0 : i32
    %c0_i32_2 = arith.constant 0 : i32
    return %c0_i32, %c0_i32_0, %c0_i32_1 : i32, i32, i32
  }
  func.func @transform_5(%arg0: i32) -> (i32, i32) {
    %c0_i32 = arith.constant 0 : i32
    %c0_i32_0 = arith.constant 0 : i32
    %c0_i32_1 = arith.constant 0 : i32
    return %c0_i32, %c0_i32_0 : i32, i32
  }
  func.func @transform_6(%arg0: i32) -> (i32, i32) {
    %c0_i32 = arith.constant 0 : i32
    %c0_i32_0 = arith.constant 0 : i32
    %c0_i32_1 = arith.constant 0 : i32
    return %c0_i32, %c0_i32_0 : i32, i32
  }
  func.func @transform_7(%arg0: i32) -> (i32, i32, i32) {
    %c0_i32 = arith.constant 0 : i32
    %c0_i32_0 = arith.constant 0 : i32
    %c0_i32_1 = arith.constant 0 : i32
    %c0_i32_2 = arith.constant 0 : i32
    return %c0_i32, %c0_i32_0, %c0_i32_1 : i32, i32, i32
  }
}

</mosaic_0001>

<llo_original>
// kernel: two_stage_detr_vrd_forward.1
$region0: #{two_stage_detr_vrd_forward.1}
  #allocation0 [shape = 'u32[]', space=smem, size = 0x4, offset = 0x4, fixed_abs, tag = 'smem constant byte address 0x4 - core index']
  #allocation1 [shape = 'u32[144,128]{1,0:T(1,128)}', space=vmem, size = 0x12000, scoped, tag = 'internal scratch']
  %s0 = inlined_call_operand.vmem [shape: bf16[8,3072], index: 0, kind: input, shape index: {}]
  %s1 = inlined_call_operand.vmem [shape: bf16[3072,48], index: 1, kind: input, shape index: {}]
  %s2 = inlined_call_operand.vmem [shape: f32[1,48], index: 2, kind: input, shape index: {}]
  %s3 = inlined_call_operand.vmem [shape: bf16[8,32], index: 3, kind: input, shape index: {}]
  %s4 = inlined_call_operand.vmem [shape: f32[2,4,32], index: 4, kind: input, shape index: {}]
  %s5 = inlined_call_operand.vmem [shape: bf16[32,96], index: 5, kind: input, shape index: {}]
  %s6 = inlined_call_operand.vmem [shape: f32[1,96], index: 6, kind: input, shape index: {}]
  %s7 = inlined_call_operand.vmem [shape: f32[2,8,128], index: 7, kind: output, shape index: {}]
  %s8 = sld [smem:[#allocation0]]
  $region38: #{two_stage_detr_vrd_forward.1} parent=0
    _
  %s10 = ssub.s32 1, %s8
  %s11 = scalar_select 0, %s10, %s8
  // Predicated region
  $region2: #{two_stage_detr_vrd_forward.1} parent=0 // pred_check
    _
  $region3: #{two_stage_detr_vrd_forward.1} parent=0 // pred_check_branch
    %13 = sbr.rel (0) target = $region5
  $region4: #{two_stage_detr_vrd_forward.1} parent=0 // pred_region
    _
  $region5: #{two_stage_detr_vrd_forward.1} parent=0 // pred_fallthru
    _
  // Predicated region
  $region6: #{two_stage_detr_vrd_forward.1} parent=0 // pred_check
    _
  $region7: #{two_stage_detr_vrd_forward.1} parent=0 // pred_check_branch
    %15 = sbr.rel (0) target = $region9
  $region8: #{two_stage_detr_vrd_forward.1} parent=0 // pred_region
    _
  $region9: #{two_stage_detr_vrd_forward.1} parent=0 // pred_fallthru
    _
  // Predicated region
  $region10: #{two_stage_detr_vrd_forward.1} parent=0 // pred_check
    _
  $region11: #{two_stage_detr_vrd_forward.1} parent=0 // pred_check_branch
    %17 = sbr.rel (0) target = $region13
  $region12: #{two_stage_detr_vrd_forward.1} parent=0 // pred_region
    _
  $region13: #{two_stage_detr_vrd_forward.1} parent=0 // pred_fallthru
    _
  // Predicated region
  $region14: #{two_stage_detr_vrd_forward.1} parent=0 // pred_check
    _
  $region15: #{two_stage_detr_vrd_forward.1} parent=0 // pred_check_branch
    %19 = sbr.rel (0) target = $region17
  $region16: #{two_stage_detr_vrd_forward.1} parent=0 // pred_region
    _
  $region17: #{two_stage_detr_vrd_forward.1} parent=0 // pred_fallthru
    _
  // Predicated region
  $region18: #{two_stage_detr_vrd_forward.1} parent=0 // pred_check
    _
  $region19: #{two_stage_detr_vrd_forward.1} parent=0 // pred_check_branch
    %21 = sbr.rel (0) target = $region21
  $region20: #{two_stage_detr_vrd_forward.1} parent=0 // pred_region
    _
  $region21: #{two_stage_detr_vrd_forward.1} parent=0 // pred_fallthru
    _
  // Predicated region
  $region22: #{two_stage_detr_vrd_forward.1} parent=0 // pred_check
    _
  $region23: #{two_stage_detr_vrd_forward.1} parent=0 // pred_check_branch
    %23 = sbr.rel (0) target = $region25
  $region24: #{two_stage_detr_vrd_forward.1} parent=0 // pred_region
    _
  $region25: #{two_stage_detr_vrd_forward.1} parent=0 // pred_fallthru
    _
  // Predicated region
  $region26: #{two_stage_detr_vrd_forward.1} parent=0 // pred_check
    _
  $region27: #{two_stage_detr_vrd_forward.1} parent=0 // pred_check_branch
    %25 = sbr.rel (0) target = $region29
  $region28: #{two_stage_detr_vrd_forward.1} parent=0 // pred_region
    _
  $region29: #{two_stage_detr_vrd_forward.1} parent=0 // pred_fallthru
    _
  %v27 = vld [vmem:[%s0] sm:$0xff]
  %v28 = vld [vmem:[%s0 + $0x8] sm:$0xff]
  %v29 = vld [vmem:[%s0 + $0x10] sm:$0xff]
  %v30 = vld [vmem:[%s0 + $0x18] sm:$0xff]
  %v31 = vld [vmem:[%s0 + $0x20] sm:$0xff]
  %v32 = vld [vmem:[%s0 + $0x28] sm:$0xff]
  %v33 = vld [vmem:[%s0 + $0x30] sm:$0xff]
  %v34 = vld [vmem:[%s0 + $0x38] sm:$0xff]
  %v35 = vld [vmem:[%s0 + $0x40] sm:$0xff]
  %v36 = vld [vmem:[%s0 + $0x48] sm:$0xff]
  %v37 = vld [vmem:[%s0 + $0x50] sm:$0xff]
  %v38 = vld [vmem:[%s0 + $0x58] sm:$0xff]
  %v39 = vld [vmem:[%s1] sm:$0xf]
  %v40 = vld [vmem:[%s1 + $0x4] sm:$0xf]
  %v41 = vld [vmem:[%s1 + $0x8] sm:$0xf]
  %v42 = vld [vmem:[%s1 + $0xc] sm:$0xf]
  %v43 = vld [vmem:[%s1 + $0x10] sm:$0xf]
  %v44 = vld [vmem:[%s1 + $0x14] sm:$0xf]
  %v45 = vld [vmem:[%s1 + $0x18] sm:$0xf]
  %v46 = vld [vmem:[%s1 + $0x1c] sm:$0xf]
  %v47 = vld [vmem:[%s1 + $0x20] sm:$0xf]
  %v48 = vld [vmem:[%s1 + $0x24] sm:$0xf]
  %v49 = vld [vmem:[%s1 + $0x28] sm:$0xf]
  %v50 = vld [vmem:[%s1 + $0x2c] sm:$0xf]
  %v51 = vld [vmem:[%s1 + $0x30] sm:$0xf]
  %v52 = vld [vmem:[%s1 + $0x34] sm:$0xf]
  %v53 = vld [vmem:[%s1 + $0x38] sm:$0xf]
  %v54 = vld [vmem:[%s1 + $0x3c] sm:$0xf]
  %v55 = vld [vmem:[%s1 + $0x40] sm:$0xf]
  %v56 = vld [vmem:[%s1 + $0x44] sm:$0xf]
  %v57 = vld [vmem:[%s1 + $0x48] sm:$0xf]
  %v58 = vld [vmem:[%s1 + $0x4c] sm:$0xf]
  %v59 = vld [vmem:[%s1 + $0x50] sm:$0xf]
  %v60 = vld [vmem:[%s1 + $0x54] sm:$0xf]
  %v61 = vld [vmem:[%s1 + $0x58] sm:$0xf]
  %v62 = vld [vmem:[%s1 + $0x5c] sm:$0xf]
  %v63 = vld [vmem:[%s1 + $0x60] sm:$0xf]
  %v64 = vld [vmem:[%s1 + $0x64] sm:$0xf]
  %v65 = vld [vmem:[%s1 + $0x68] sm:$0xf]
  %v66 = vld [vmem:[%s1 + $0x6c] sm:$0xf]
  %v67 = vld [vmem:[%s1 + $0x70] sm:$0xf]
  %v68 = vld [vmem:[%s1 + $0x74] sm:$0xf]
  %v69 = vld [vmem:[%s1 + $0x78] sm:$0xf]
  %v70 = vld [vmem:[%s1 + $0x7c] sm:$0xf]
  %v71 = vld [vmem:[%s1 + $0x80] sm:$0xf]
  %v72 = vld [vmem:[%s1 + $0x84] sm:$0xf]
  %v73 = vld [vmem:[%s1 + $0x88] sm:$0xf]
  %v74 = vld [vmem:[%s1 + $0x8c] sm:$0xf]
  %v75 = vld [vmem:[%s1 + $0x90] sm:$0xf]
  %v76 = vld [vmem:[%s1 + $0x94] sm:$0xf]
  %v77 = vld [vmem:[%s1 + $0x98] sm:$0xf]
  %v78 = vld [vmem:[%s1 + $0x9c] sm:$0xf]
  %v79 = vld [vmem:[%s1 + $0xa0] sm:$0xf]
  %v80 = vld [vmem:[%s1 + $0xa4] sm:$0xf]
  %v81 = vld [vmem:[%s1 + $0xa8] sm:$0xf]
  %v82 = vld [vmem:[%s1 + $0xac] sm:$0xf]
  %v83 = vld [vmem:[%s1 + $0xb0] sm:$0xf]
  %v84 = vld [vmem:[%s1 + $0xb4] sm:$0xf]
  %v85 = vld [vmem:[%s1 + $0xb8] sm:$0xf]
  %v86 = vld [vmem:[%s1 + $0xbc] sm:$0xf]
  %v87 = vld [vmem:[%s1 + $0xc0] sm:$0xf]
  %v88 = vld [vmem:[%s1 + $0xc4] sm:$0xf]
  %v89 = vld [vmem:[%s1 + $0xc8] sm:$0xf]
  %v90 = vld [vmem:[%s1 + $0xcc] sm:$0xf]
  %v91 = vld [vmem:[%s1 + $0xd0] sm:$0xf]
  %v92 = vld [vmem:[%s1 + $0xd4] sm:$0xf]
  %v93 = vld [vmem:[%s1 + $0xd8] sm:$0xf]
  %v94 = vld [vmem:[%s1 + $0xdc] sm:$0xf]
  %v95 = vld [vmem:[%s1 + $0xe0] sm:$0xf]
  %v96 = vld [vmem:[%s1 + $0xe4] sm:$0xf]
  %v97 = vld [vmem:[%s1 + $0xe8] sm:$0xf]
  %v98 = vld [vmem:[%s1 + $0xec] sm:$0xf]
  %v99 = vld [vmem:[%s1 + $0xf0] sm:$0xf]
  %v100 = vld [vmem:[%s1 + $0xf4] sm:$0xf]
  %v101 = vld [vmem:[%s1 + $0xf8] sm:$0xf]
  %v102 = vld [vmem:[%s1 + $0xfc] sm:$0xf]
  %v103 = vld [vmem:[%s1 + $0x100] sm:$0xf]
  %v104 = vld [vmem:[%s1 + $0x104] sm:$0xf]
  %v105 = vld [vmem:[%s1 + $0x108] sm:$0xf]
  %v106 = vld [vmem:[%s1 + $0x10c] sm:$0xf]
  %v107 = vld [vmem:[%s1 + $0x110] sm:$0xf]
  %v108 = vld [vmem:[%s1 + $0x114] sm:$0xf]
  %v109 = vld [vmem:[%s1 + $0x118] sm:$0xf]
  %v110 = vld [vmem:[%s1 + $0x11c] sm:$0xf]
  %v111 = vld [vmem:[%s1 + $0x120] sm:$0xf]
  %v112 = vld [vmem:[%s1 + $0x124] sm:$0xf]
  %v113 = vld [vmem:[%s1 + $0x128] sm:$0xf]
  %v114 = vld [vmem:[%s1 + $0x12c] sm:$0xf]
  %v115 = vld [vmem:[%s1 + $0x130] sm:$0xf]
  %v116 = vld [vmem:[%s1 + $0x134] sm:$0xf]
  %v117 = vld [vmem:[%s1 + $0x138] sm:$0xf]
  %v118 = vld [vmem:[%s1 + $0x13c] sm:$0xf]
  %v119 = vld [vmem:[%s1 + $0x140] sm:$0xf]
  %v120 = vld [vmem:[%s1 + $0x144] sm:$0xf]
  %v121 = vld [vmem:[%s1 + $0x148] sm:$0xf]
  %v122 = vld [vmem:[%s1 + $0x14c] sm:$0xf]
  %v123 = vld [vmem:[%s1 + $0x150] sm:$0xf]
  %v124 = vld [vmem:[%s1 + $0x154] sm:$0xf]
  %v125 = vld [vmem:[%s1 + $0x158] sm:$0xf]
  %v126 = vld [vmem:[%s1 + $0x15c] sm:$0xf]
  %v127 = vld [vmem:[%s1 + $0x160] sm:$0xf]
  %v128 = vld [vmem:[%s1 + $0x164] sm:$0xf]
  %v129 = vld [vmem:[%s1 + $0x168] sm:$0xf]
  %v130 = vld [vmem:[%s1 + $0x16c] sm:$0xf]
  %v131 = vld [vmem:[%s1 + $0x170] sm:$0xf]
  %v132 = vld [vmem:[%s1 + $0x174] sm:$0xf]
  %v133 = vld [vmem:[%s1 + $0x178] sm:$0xf]
  %v134 = vld [vmem:[%s1 + $0x17c] sm:$0xf]
  %v135 = vld [vmem:[%s1 + $0x180] sm:$0xf]
  %v136 = vld [vmem:[%s1 + $0x184] sm:$0xf]
  %v137 = vld [vmem:[%s1 + $0x188] sm:$0xf]
  %v138 = vld [vmem:[%s1 + $0x18c] sm:$0xf]
  %v139 = vld [vmem:[%s1 + $0x190] sm:$0xf]
  %v140 = vld [vmem:[%s1 + $0x194] sm:$0xf]
  %v141 = vld [vmem:[%s1 + $0x198] sm:$0xf]
  %v142 = vld [vmem:[%s1 + $0x19c] sm:$0xf]
  %v143 = vld [vmem:[%s1 + $0x1a0] sm:$0xf]
  %v144 = vld [vmem:[%s1 + $0x1a4] sm:$0xf]
  %v145 = vld [vmem:[%s1 + $0x1a8] sm:$0xf]
  %v146 = vld [vmem:[%s1 + $0x1ac] sm:$0xf]
  %v147 = vld [vmem:[%s1 + $0x1b0] sm:$0xf]
  %v148 = vld [vmem:[%s1 + $0x1b4] sm:$0xf]
  %v149 = vld [vmem:[%s1 + $0x1b8] sm:$0xf]
  %v150 = vld [vmem:[%s1 + $0x1bc] sm:$0xf]
  %v151 = vld [vmem:[%s1 + $0x1c0] sm:$0xf]
  %v152 = vld [vmem:[%s1 + $0x1c4] sm:$0xf]
  %v153 = vld [vmem:[%s1 + $0x1c8] sm:$0xf]
  %v154 = vld [vmem:[%s1 + $0x1cc] sm:$0xf]
  %v155 = vld [vmem:[%s1 + $0x1d0] sm:$0xf]
  %v156 = vld [vmem:[%s1 + $0x1d4] sm:$0xf]
  %v157 = vld [vmem:[%s1 + $0x1d8] sm:$0xf]
  %v158 = vld [vmem:[%s1 + $0x1dc] sm:$0xf]
  %v159 = vld [vmem:[%s1 + $0x1e0] sm:$0xf]
  %v160 = vld [vmem:[%s1 + $0x1e4] sm:$0xf]
  %v161 = vld [vmem:[%s1 + $0x1e8] sm:$0xf]
  %v162 = vld [vmem:[%s1 + $0x1ec] sm:$0xf]
  %v163 = vld [vmem:[%s1 + $0x1f0] sm:$0xf]
  %v164 = vld [vmem:[%s1 + $0x1f4] sm:$0xf]
  %v165 = vld [vmem:[%s1 + $0x1f8] sm:$0xf]
  %v166 = vld [vmem:[%s1 + $0x1fc] sm:$0xf]
  %v167 = vld [vmem:[%s1 + $0x200] sm:$0xf]
  %v168 = vld [vmem:[%s1 + $0x204] sm:$0xf]
  %v169 = vld [vmem:[%s1 + $0x208] sm:$0xf]
  %v170 = vld [vmem:[%s1 + $0x20c] sm:$0xf]
  %v171 = vld [vmem:[%s1 + $0x210] sm:$0xf]
  %v172 = vld [vmem:[%s1 + $0x214] sm:$0xf]
  %v173 = vld [vmem:[%s1 + $0x218] sm:$0xf]
  %v174 = vld [vmem:[%s1 + $0x21c] sm:$0xf]
  %v175 = vld [vmem:[%s1 + $0x220] sm:$0xf]
  %v176 = vld [vmem:[%s1 + $0x224] sm:$0xf]
  %v177 = vld [vmem:[%s1 + $0x228] sm:$0xf]
  %v178 = vld [vmem:[%s1 + $0x22c] sm:$0xf]
  %v179 = vld [vmem:[%s1 + $0x230] sm:$0xf]
  %v180 = vld [vmem:[%s1 + $0x234] sm:$0xf]
  %v181 = vld [vmem:[%s1 + $0x238] sm:$0xf]
  %v182 = vld [vmem:[%s1 + $0x23c] sm:$0xf]
  %v183 = vld [vmem:[%s1 + $0x240] sm:$0xf]
  %v184 = vld [vmem:[%s1 + $0x244] sm:$0xf]
  %v185 = vld [vmem:[%s1 + $0x248] sm:$0xf]
  %v186 = vld [vmem:[%s1 + $0x24c] sm:$0xf]
  %v187 = vld [vmem:[%s1 + $0x250] sm:$0xf]
  %v188 = vld [vmem:[%s1 + $0x254] sm:$0xf]
  %v189 = vld [vmem:[%s1 + $0x258] sm:$0xf]
  %v190 = vld [vmem:[%s1 + $0x25c] sm:$0xf]
  %v191 = vld [vmem:[%s1 + $0x260] sm:$0xf]
  %v192 = vld [vmem:[%s1 + $0x264] sm:$0xf]
  %v193 = vld [vmem:[%s1 + $0x268] sm:$0xf]
  %v194 = vld [vmem:[%s1 + $0x26c] sm:$0xf]
  %v195 = vld [vmem:[%s1 + $0x270] sm:$0xf]
  %v196 = vld [vmem:[%s1 + $0x274] sm:$0xf]
  %v197 = vld [vmem:[%s1 + $0x278] sm:$0xf]
  %v198 = vld [vmem:[%s1 + $0x27c] sm:$0xf]
  %v199 = vld [vmem:[%s1 + $0x280] sm:$0xf]
  %v200 = vld [vmem:[%s1 + $0x284] sm:$0xf]
  %v201 = vld [vmem:[%s1 + $0x288] sm:$0xf]
  %v202 = vld [vmem:[%s1 + $0x28c] sm:$0xf]
  %v203 = vld [vmem:[%s1 + $0x290] sm:$0xf]
  %v204 = vld [vmem:[%s1 + $0x294] sm:$0xf]
  %v205 = vld [vmem:[%s1 + $0x298] sm:$0xf]
  %v206 = vld [vmem:[%s1 + $0x29c] sm:$0xf]
  %v207 = vld [vmem:[%s1 + $0x2a0] sm:$0xf]
  %v208 = vld [vmem:[%s1 + $0x2a4] sm:$0xf]
  %v209 = vld [vmem:[%s1 + $0x2a8] sm:$0xf]
  %v210 = vld [vmem:[%s1 + $0x2ac] sm:$0xf]
  %v211 = vld [vmem:[%s1 + $0x2b0] sm:$0xf]
  %v212 = vld [vmem:[%s1 + $0x2b4] sm:$0xf]
  %v213 = vld [vmem:[%s1 + $0x2b8] sm:$0xf]
  %v214 = vld [vmem:[%s1 + $0x2bc] sm:$0xf]
  %v215 = vld [vmem:[%s1 + $0x2c0] sm:$0xf]
  %v216 = vld [vmem:[%s1 + $0x2c4] sm:$0xf]
  %v217 = vld [vmem:[%s1 + $0x2c8] sm:$0xf]
  %v218 = vld [vmem:[%s1 + $0x2cc] sm:$0xf]
  %v219 = vld [vmem:[%s1 + $0x2d0] sm:$0xf]
  %v220 = vld [vmem:[%s1 + $0x2d4] sm:$0xf]
  %v221 = vld [vmem:[%s1 + $0x2d8] sm:$0xf]
  %v222 = vld [vmem:[%s1 + $0x2dc] sm:$0xf]
  %v223 = vld [vmem:[%s1 + $0x2e0] sm:$0xf]
  %v224 = vld [vmem:[%s1 + $0x2e4] sm:$0xf]
  %v225 = vld [vmem:[%s1 + $0x2e8] sm:$0xf]
  %v226 = vld [vmem:[%s1 + $0x2ec] sm:$0xf]
  %v227 = vld [vmem:[%s1 + $0x2f0] sm:$0xf]
  %v228 = vld [vmem:[%s1 + $0x2f4] sm:$0xf]
  %v229 = vld [vmem:[%s1 + $0x2f8] sm:$0xf]
  %v230 = vld [vmem:[%s1 + $0x2fc] sm:$0xf]
  %v231 = vld [vmem:[%s1 + $0x300] sm:$0xf]
  %v232 = vld [vmem:[%s1 + $0x304] sm:$0xf]
  %v233 = vld [vmem:[%s1 + $0x308] sm:$0xf]
  %v234 = vld [vmem:[%s1 + $0x30c] sm:$0xf]
  %v235 = vld [vmem:[%s1 + $0x310] sm:$0xf]
  %v236 = vld [vmem:[%s1 + $0x314] sm:$0xf]
  %v237 = vld [vmem:[%s1 + $0x318] sm:$0xf]
  %v238 = vld [vmem:[%s1 + $0x31c] sm:$0xf]
  %v239 = vld [vmem:[%s1 + $0x320] sm:$0xf]
  %v240 = vld [vmem:[%s1 + $0x324] sm:$0xf]
  %v241 = vld [vmem:[%s1 + $0x328] sm:$0xf]
  %v242 = vld [vmem:[%s1 + $0x32c] sm:$0xf]
  %v243 = vld [vmem:[%s1 + $0x330] sm:$0xf]
  %v244 = vld [vmem:[%s1 + $0x334] sm:$0xf]
  %v245 = vld [vmem:[%s1 + $0x338] sm:$0xf]
  %v246 = vld [vmem:[%s1 + $0x33c] sm:$0xf]
  %v247 = vld [vmem:[%s1 + $0x340] sm:$0xf]
  %v248 = vld [vmem:[%s1 + $0x344] sm:$0xf]
  %v249 = vld [vmem:[%s1 + $0x348] sm:$0xf]
  %v250 = vld [vmem:[%s1 + $0x34c] sm:$0xf]
  %v251 = vld [vmem:[%s1 + $0x350] sm:$0xf]
  %v252 = vld [vmem:[%s1 + $0x354] sm:$0xf]
  %v253 = vld [vmem:[%s1 + $0x358] sm:$0xf]
  %v254 = vld [vmem:[%s1 + $0x35c] sm:$0xf]
  %v255 = vld [vmem:[%s1 + $0x360] sm:$0xf]
  %v256 = vld [vmem:[%s1 + $0x364] sm:$0xf]
  %v257 = vld [vmem:[%s1 + $0x368] sm:$0xf]
  %v258 = vld [vmem:[%s1 + $0x36c] sm:$0xf]
  %v259 = vld [vmem:[%s1 + $0x370] sm:$0xf]
  %v260 = vld [vmem:[%s1 + $0x374] sm:$0xf]
  %v261 = vld [vmem:[%s1 + $0x378] sm:$0xf]
  %v262 = vld [vmem:[%s1 + $0x37c] sm:$0xf]
  %v263 = vld [vmem:[%s1 + $0x380] sm:$0xf]
  %v264 = vld [vmem:[%s1 + $0x384] sm:$0xf]
  %v265 = vld [vmem:[%s1 + $0x388] sm:$0xf]
  %v266 = vld [vmem:[%s1 + $0x38c] sm:$0xf]
  %v267 = vld [vmem:[%s1 + $0x390] sm:$0xf]
  %v268 = vld [vmem:[%s1 + $0x394] sm:$0xf]
  %v269 = vld [vmem:[%s1 + $0x398] sm:$0xf]
  %v270 = vld [vmem:[%s1 + $0x39c] sm:$0xf]
  %v271 = vld [vmem:[%s1 + $0x3a0] sm:$0xf]
  %v272 = vld [vmem:[%s1 + $0x3a4] sm:$0xf]
  %v273 = vld [vmem:[%s1 + $0x3a8] sm:$0xf]
  %v274 = vld [vmem:[%s1 + $0x3ac] sm:$0xf]
  %v275 = vld [vmem:[%s1 + $0x3b0] sm:$0xf]
  %v276 = vld [vmem:[%s1 + $0x3b4] sm:$0xf]
  %v277 = vld [vmem:[%s1 + $0x3b8] sm:$0xf]
  %v278 = vld [vmem:[%s1 + $0x3bc] sm:$0xf]
  %v279 = vld [vmem:[%s1 + $0x3c0] sm:$0xf]
  %v280 = vld [vmem:[%s1 + $0x3c4] sm:$0xf]
  %v281 = vld [vmem:[%s1 + $0x3c8] sm:$0xf]
  %v282 = vld [vmem:[%s1 + $0x3cc] sm:$0xf]
  %v283 = vld [vmem:[%s1 + $0x3d0] sm:$0xf]
  %v284 = vld [vmem:[%s1 + $0x3d4] sm:$0xf]
  %v285 = vld [vmem:[%s1 + $0x3d8] sm:$0xf]
  %v286 = vld [vmem:[%s1 + $0x3dc] sm:$0xf]
  %v287 = vld [vmem:[%s1 + $0x3e0] sm:$0xf]
  %v288 = vld [vmem:[%s1 + $0x3e4] sm:$0xf]
  %v289 = vld [vmem:[%s1 + $0x3e8] sm:$0xf]
  %v290 = vld [vmem:[%s1 + $0x3ec] sm:$0xf]
  %v291 = vld [vmem:[%s1 + $0x3f0] sm:$0xf]
  %v292 = vld [vmem:[%s1 + $0x3f4] sm:$0xf]
  %v293 = vld [vmem:[%s1 + $0x3f8] sm:$0xf]
  %v294 = vld [vmem:[%s1 + $0x3fc] sm:$0xf]
  %v295 = vld [vmem:[%s1 + $0x400] sm:$0xf]
  %v296 = vld [vmem:[%s1 + $0x404] sm:$0xf]
  %v297 = vld [vmem:[%s1 + $0x408] sm:$0xf]
  %v298 = vld [vmem:[%s1 + $0x40c] sm:$0xf]
  %v299 = vld [vmem:[%s1 + $0x410] sm:$0xf]
  %v300 = vld [vmem:[%s1 + $0x414] sm:$0xf]
  %v301 = vld [vmem:[%s1 + $0x418] sm:$0xf]
  %v302 = vld [vmem:[%s1 + $0x41c] sm:$0xf]
  %v303 = vld [vmem:[%s1 + $0x420] sm:$0xf]
  %v304 = vld [vmem:[%s1 + $0x424] sm:$0xf]
  %v305 = vld [vmem:[%s1 + $0x428] sm:$0xf]
  %v306 = vld [vmem:[%s1 + $0x42c] sm:$0xf]
  %v307 = vld [vmem:[%s1 + $0x430] sm:$0xf]
  %v308 = vld [vmem:[%s1 + $0x434] sm:$0xf]
  %v309 = vld [vmem:[%s1 + $0x438] sm:$0xf]
  %v310 = vld [vmem:[%s1 + $0x43c] sm:$0xf]
  %v311 = vld [vmem:[%s1 + $0x440] sm:$0xf]
  %v312 = vld [vmem:[%s1 + $0x444] sm:$0xf]
  %v313 = vld [vmem:[%s1 + $0x448] sm:$0xf]
  %v314 = vld [vmem:[%s1 + $0x44c] sm:$0xf]
  %v315 = vld [vmem:[%s1 + $0x450] sm:$0xf]
  %v316 = vld [vmem:[%s1 + $0x454] sm:$0xf]
  %v317 = vld [vmem:[%s1 + $0x458] sm:$0xf]
  %v318 = vld [vmem:[%s1 + $0x45c] sm:$0xf]
  %v319 = vld [vmem:[%s1 + $0x460] sm:$0xf]
  %v320 = vld [vmem:[%s1 + $0x464] sm:$0xf]
  %v321 = vld [vmem:[%s1 + $0x468] sm:$0xf]
  %v322 = vld [vmem:[%s1 + $0x46c] sm:$0xf]
  %v323 = vld [vmem:[%s1 + $0x470] sm:$0xf]
  %v324 = vld [vmem:[%s1 + $0x474] sm:$0xf]
  %v325 = vld [vmem:[%s1 + $0x478] sm:$0xf]
  %v326 = vld [vmem:[%s1 + $0x47c] sm:$0xf]
  %v327 = vld [vmem:[%s1 + $0x480] sm:$0xf]
  %v328 = vld [vmem:[%s1 + $0x484] sm:$0xf]
  %v329 = vld [vmem:[%s1 + $0x488] sm:$0xf]
  %v330 = vld [vmem:[%s1 + $0x48c] sm:$0xf]
  %v331 = vld [vmem:[%s1 + $0x490] sm:$0xf]
  %v332 = vld [vmem:[%s1 + $0x494] sm:$0xf]
  %v333 = vld [vmem:[%s1 + $0x498] sm:$0xf]
  %v334 = vld [vmem:[%s1 + $0x49c] sm:$0xf]
  %v335 = vld [vmem:[%s1 + $0x4a0] sm:$0xf]
  %v336 = vld [vmem:[%s1 + $0x4a4] sm:$0xf]
  %v337 = vld [vmem:[%s1 + $0x4a8] sm:$0xf]
  %v338 = vld [vmem:[%s1 + $0x4ac] sm:$0xf]
  %v339 = vld [vmem:[%s1 + $0x4b0] sm:$0xf]
  %v340 = vld [vmem:[%s1 + $0x4b4] sm:$0xf]
  %v341 = vld [vmem:[%s1 + $0x4b8] sm:$0xf]
  %v342 = vld [vmem:[%s1 + $0x4bc] sm:$0xf]
  %v343 = vld [vmem:[%s1 + $0x4c0] sm:$0xf]
  %v344 = vld [vmem:[%s1 + $0x4c4] sm:$0xf]
  %v345 = vld [vmem:[%s1 + $0x4c8] sm:$0xf]
  %v346 = vld [vmem:[%s1 + $0x4cc] sm:$0xf]
  %v347 = vld [vmem:[%s1 + $0x4d0] sm:$0xf]
  %v348 = vld [vmem:[%s1 + $0x4d4] sm:$0xf]
  %v349 = vld [vmem:[%s1 + $0x4d8] sm:$0xf]
  %v350 = vld [vmem:[%s1 + $0x4dc] sm:$0xf]
  %v351 = vld [vmem:[%s1 + $0x4e0] sm:$0xf]
  %v352 = vld [vmem:[%s1 + $0x4e4] sm:$0xf]
  %v353 = vld [vmem:[%s1 + $0x4e8] sm:$0xf]
  %v354 = vld [vmem:[%s1 + $0x4ec] sm:$0xf]
  %v355 = vld [vmem:[%s1 + $0x4f0] sm:$0xf]
  %v356 = vld [vmem:[%s1 + $0x4f4] sm:$0xf]
  %v357 = vld [vmem:[%s1 + $0x4f8] sm:$0xf]
  %v358 = vld [vmem:[%s1 + $0x4fc] sm:$0xf]
  %v359 = vld [vmem:[%s1 + $0x500] sm:$0xf]
  %v360 = vld [vmem:[%s1 + $0x504] sm:$0xf]
  %v361 = vld [vmem:[%s1 + $0x508] sm:$0xf]
  %v362 = vld [vmem:[%s1 + $0x50c] sm:$0xf]
  %v363 = vld [vmem:[%s1 + $0x510] sm:$0xf]
  %v364 = vld [vmem:[%s1 + $0x514] sm:$0xf]
  %v365 = vld [vmem:[%s1 + $0x518] sm:$0xf]
  %v366 = vld [vmem:[%s1 + $0x51c] sm:$0xf]
  %v367 = vld [vmem:[%s1 + $0x520] sm:$0xf]
  %v368 = vld [vmem:[%s1 + $0x524] sm:$0xf]
  %v369 = vld [vmem:[%s1 + $0x528] sm:$0xf]
  %v370 = vld [vmem:[%s1 + $0x52c] sm:$0xf]
  %v371 = vld [vmem:[%s1 + $0x530] sm:$0xf]
  %v372 = vld [vmem:[%s1 + $0x534] sm:$0xf]
  %v373 = vld [vmem:[%s1 + $0x538] sm:$0xf]
  %v374 = vld [vmem:[%s1 + $0x53c] sm:$0xf]
  %v375 = vld [vmem:[%s1 + $0x540] sm:$0xf]
  %v376 = vld [vmem:[%s1 + $0x544] sm:$0xf]
  %v377 = vld [vmem:[%s1 + $0x548] sm:$0xf]
  %v378 = vld [vmem:[%s1 + $0x54c] sm:$0xf]
  %v379 = vld [vmem:[%s1 + $0x550] sm:$0xf]
  %v380 = vld [vmem:[%s1 + $0x554] sm:$0xf]
  %v381 = vld [vmem:[%s1 + $0x558] sm:$0xf]
  %v382 = vld [vmem:[%s1 + $0x55c] sm:$0xf]
  %v383 = vld [vmem:[%s1 + $0x560] sm:$0xf]
  %v384 = vld [vmem:[%s1 + $0x564] sm:$0xf]
  %v385 = vld [vmem:[%s1 + $0x568] sm:$0xf]
  %v386 = vld [vmem:[%s1 + $0x56c] sm:$0xf]
  %v387 = vld [vmem:[%s1 + $0x570] sm:$0xf]
  %v388 = vld [vmem:[%s1 + $0x574] sm:$0xf]
  %v389 = vld [vmem:[%s1 + $0x578] sm:$0xf]
  %v390 = vld [vmem:[%s1 + $0x57c] sm:$0xf]
  %v391 = vld [vmem:[%s1 + $0x580] sm:$0xf]
  %v392 = vld [vmem:[%s1 + $0x584] sm:$0xf]
  %v393 = vld [vmem:[%s1 + $0x588] sm:$0xf]
  %v394 = vld [vmem:[%s1 + $0x58c] sm:$0xf]
  %v395 = vld [vmem:[%s1 + $0x590] sm:$0xf]
  %v396 = vld [vmem:[%s1 + $0x594] sm:$0xf]
  %v397 = vld [vmem:[%s1 + $0x598] sm:$0xf]
  %v398 = vld [vmem:[%s1 + $0x59c] sm:$0xf]
  %v399 = vld [vmem:[%s1 + $0x5a0] sm:$0xf]
  %v400 = vld [vmem:[%s1 + $0x5a4] sm:$0xf]
  %v401 = vld [vmem:[%s1 + $0x5a8] sm:$0xf]
  %v402 = vld [vmem:[%s1 + $0x5ac] sm:$0xf]
  %v403 = vld [vmem:[%s1 + $0x5b0] sm:$0xf]
  %v404 = vld [vmem:[%s1 + $0x5b4] sm:$0xf]
  %v405 = vld [vmem:[%s1 + $0x5b8] sm:$0xf]
  %v406 = vld [vmem:[%s1 + $0x5bc] sm:$0xf]
  %v407 = vld [vmem:[%s1 + $0x5c0] sm:$0xf]
  %v408 = vld [vmem:[%s1 + $0x5c4] sm:$0xf]
  %v409 = vld [vmem:[%s1 + $0x5c8] sm:$0xf]
  %v410 = vld [vmem:[%s1 + $0x5cc] sm:$0xf]
  %v411 = vld [vmem:[%s1 + $0x5d0] sm:$0xf]
  %v412 = vld [vmem:[%s1 + $0x5d4] sm:$0xf]
  %v413 = vld [vmem:[%s1 + $0x5d8] sm:$0xf]
  %v414 = vld [vmem:[%s1 + $0x5dc] sm:$0xf]
  %v415 = vld [vmem:[%s1 + $0x5e0] sm:$0xf]
  %v416 = vld [vmem:[%s1 + $0x5e4] sm:$0xf]
  %v417 = vld [vmem:[%s1 + $0x5e8] sm:$0xf]
  %v418 = vld [vmem:[%s1 + $0x5ec] sm:$0xf]
  %v419 = vld [vmem:[%s1 + $0x5f0] sm:$0xf]
  %v420 = vld [vmem:[%s1 + $0x5f4] sm:$0xf]
  %v421 = vld [vmem:[%s1 + $0x5f8] sm:$0xf]
  %v422 = vld [vmem:[%s1 + $0x5fc] sm:$0xf]
  %v423 = vld [vmem:[%s2] sm:$0x1]
  %v425 = vlaneseq
  %v426 = vshrl.u32 %v425, 7
  %v427 = vsub.s32 0, %v426
  %v428 = vrot.slane %v423, %v427
  %v442 = vunpack.c.l.b16 %v27
  %v443 = vunpack.c.h.b16 %v27
  %v444 = vunpack.c.l.b16 %v28
  %v445 = vunpack.c.h.b16 %v28
  %v446 = vunpack.c.l.b16 %v29
  %v447 = vunpack.c.h.b16 %v29
  %v448 = vunpack.c.l.b16 %v30
  %v449 = vunpack.c.h.b16 %v30
  %v450 = vunpack.c.l.b16 %v31
  %v451 = vunpack.c.h.b16 %v31
  %v452 = vunpack.c.l.b16 %v32
  %v453 = vunpack.c.h.b16 %v32
  %v454 = vunpack.c.l.b16 %v33
  %v455 = vunpack.c.h.b16 %v33
  %v456 = vunpack.c.l.b16 %v34
  %v457 = vunpack.c.h.b16 %v34
  %v458 = vunpack.c.l.b16 %v35
  %v459 = vunpack.c.h.b16 %v35
  %v460 = vunpack.c.l.b16 %v36
  %v461 = vunpack.c.h.b16 %v36
  %v462 = vunpack.c.l.b16 %v37
  %v463 = vunpack.c.h.b16 %v37
  %v464 = vunpack.c.l.b16 %v38
  %v465 = vunpack.c.h.b16 %v38
  %v466 = vpack.c.b16 %v442, %v442
  %v467 = vpack.c.b16 %v443, %v443
  %v468 = vpack.c.b16 %v444, %v444
  %v469 = vpack.c.b16 %v445, %v445
  %v470 = vpack.c.b16 %v446, %v446
  %v471 = vpack.c.b16 %v447, %v447
  %v472 = vpack.c.b16 %v448, %v448
  %v473 = vpack.c.b16 %v449, %v449
  %v474 = vpack.c.b16 %v450, %v450
  %v475 = vpack.c.b16 %v451, %v451
  %v476 = vpack.c.b16 %v452, %v452
  %v477 = vpack.c.b16 %v453, %v453
  %v478 = vpack.c.b16 %v454, %v454
  %v479 = vpack.c.b16 %v455, %v455
  %v480 = vpack.c.b16 %v456, %v456
  %v481 = vpack.c.b16 %v457, %v457
  %v482 = vpack.c.b16 %v458, %v458
  %v483 = vpack.c.b16 %v459, %v459
  %v484 = vpack.c.b16 %v460, %v460
  %v485 = vpack.c.b16 %v461, %v461
  %v486 = vpack.c.b16 %v462, %v462
  %v487 = vpack.c.b16 %v463, %v463
  %v488 = vpack.c.b16 %v464, %v464
  %v489 = vpack.c.b16 %v465, %v465
  %v898 = vunpack.c.l.b16 %v39
  %v899 = vunpack.c.l.b16 %v40
  %v900 = vunpack.c.l.b16 %v41
  %v901 = vunpack.c.l.b16 %v42
  %v902 = vunpack.c.l.b16 %v43
  %v903 = vunpack.c.l.b16 %v44
  %v904 = vunpack.c.l.b16 %v45
  %v905 = vunpack.c.l.b16 %v46
  %v906 = vunpack.c.l.b16 %v47
  %v907 = vunpack.c.l.b16 %v48
  %v908 = vunpack.c.l.b16 %v49
  %v909 = vunpack.c.l.b16 %v50
  %v910 = vunpack.c.l.b16 %v51
  %v911 = vunpack.c.l.b16 %v52
  %v912 = vunpack.c.l.b16 %v53
  %v913 = vunpack.c.l.b16 %v54
  %v914 = vunpack.c.l.b16 %v55
  %v915 = vunpack.c.l.b16 %v56
  %v916 = vunpack.c.l.b16 %v57
  %v917 = vunpack.c.l.b16 %v58
  %v918 = vunpack.c.l.b16 %v59
  %v919 = vunpack.c.l.b16 %v60
  %v920 = vunpack.c.l.b16 %v61
  %v921 = vunpack.c.l.b16 %v62
  %v922 = vunpack.c.l.b16 %v63
  %v923 = vunpack.c.l.b16 %v64
  %v924 = vunpack.c.l.b16 %v65
  %v925 = vunpack.c.l.b16 %v66
  %v926 = vunpack.c.l.b16 %v67
  %v927 = vunpack.c.l.b16 %v68
  %v928 = vunpack.c.l.b16 %v69
  %v929 = vunpack.c.l.b16 %v70
  %v930 = vunpack.c.l.b16 %v71
  %v931 = vunpack.c.l.b16 %v72
  %v932 = vunpack.c.l.b16 %v73
  %v933 = vunpack.c.l.b16 %v74
  %v934 = vunpack.c.l.b16 %v75
  %v935 = vunpack.c.l.b16 %v76
  %v936 = vunpack.c.l.b16 %v77
  %v937 = vunpack.c.l.b16 %v78
  %v938 = vunpack.c.l.b16 %v79
  %v939 = vunpack.c.l.b16 %v80
  %v940 = vunpack.c.l.b16 %v81
  %v941 = vunpack.c.l.b16 %v82
  %v942 = vunpack.c.l.b16 %v83
  %v943 = vunpack.c.l.b16 %v84
  %v944 = vunpack.c.l.b16 %v85
  %v945 = vunpack.c.l.b16 %v86
  %v946 = vunpack.c.l.b16 %v87
  %v947 = vunpack.c.l.b16 %v88
  %v948 = vunpack.c.l.b16 %v89
  %v949 = vunpack.c.l.b16 %v90
  %v950 = vunpack.c.l.b16 %v91
  %v951 = vunpack.c.l.b16 %v92
  %v952 = vunpack.c.l.b16 %v93
  %v953 = vunpack.c.l.b16 %v94
  %v954 = vunpack.c.l.b16 %v95
  %v955 = vunpack.c.l.b16 %v96
  %v956 = vunpack.c.l.b16 %v97
  %v957 = vunpack.c.l.b16 %v98
  %v958 = vunpack.c.l.b16 %v99
  %v959 = vunpack.c.l.b16 %v100
  %v960 = vunpack.c.l.b16 %v101
  %v961 = vunpack.c.l.b16 %v102
  %v962 = vunpack.c.l.b16 %v103
  %v963 = vunpack.c.l.b16 %v104
  %v964 = vunpack.c.l.b16 %v105
  %v965 = vunpack.c.l.b16 %v106
  %v966 = vunpack.c.l.b16 %v107
  %v967 = vunpack.c.l.b16 %v108
  %v968 = vunpack.c.l.b16 %v109
  %v969 = vunpack.c.l.b16 %v110
  %v970 = vunpack.c.l.b16 %v111
  %v971 = vunpack.c.l.b16 %v112
  %v972 = vunpack.c.l.b16 %v113
  %v973 = vunpack.c.l.b16 %v114
  %v974 = vunpack.c.l.b16 %v115
  %v975 = vunpack.c.l.b16 %v116
  %v976 = vunpack.c.l.b16 %v117
  %v977 = vunpack.c.l.b16 %v118
  %v978 = vunpack.c.l.b16 %v119
  %v979 = vunpack.c.l.b16 %v120
  %v980 = vunpack.c.l.b16 %v121
  %v981 = vunpack.c.l.b16 %v122
  %v982 = vunpack.c.l.b16 %v123
  %v983 = vunpack.c.l.b16 %v124
  %v984 = vunpack.c.l.b16 %v125
  %v985 = vunpack.c.l.b16 %v126
  %v986 = vunpack.c.l.b16 %v127
  %v987 = vunpack.c.l.b16 %v128
  %v988 = vunpack.c.l.b16 %v129
  %v989 = vunpack.c.l.b16 %v130
  %v990 = vunpack.c.l.b16 %v131
  %v991 = vunpack.c.l.b16 %v132
  %v992 = vunpack.c.l.b16 %v133
  %v993 = vunpack.c.l.b16 %v134
  %v994 = vunpack.c.l.b16 %v135
  %v995 = vunpack.c.l.b16 %v136
  %v996 = vunpack.c.l.b16 %v137
  %v997 = vunpack.c.l.b16 %v138
  %v998 = vunpack.c.l.b16 %v139
  %v999 = vunpack.c.l.b16 %v140
  %v1000 = vunpack.c.l.b16 %v141
  %v1001 = vunpack.c.l.b16 %v142
  %v1002 = vunpack.c.l.b16 %v143
  %v1003 = vunpack.c.l.b16 %v144
  %v1004 = vunpack.c.l.b16 %v145
  %v1005 = vunpack.c.l.b16 %v146
  %v1006 = vunpack.c.l.b16 %v147
  %v1007 = vunpack.c.l.b16 %v148
  %v1008 = vunpack.c.l.b16 %v149
  %v1009 = vunpack.c.l.b16 %v150
  %v1010 = vunpack.c.l.b16 %v151
  %v1011 = vunpack.c.l.b16 %v152
  %v1012 = vunpack.c.l.b16 %v153
  %v1013 = vunpack.c.l.b16 %v154
  %v1014 = vunpack.c.l.b16 %v155
  %v1015 = vunpack.c.l.b16 %v156
  %v1016 = vunpack.c.l.b16 %v157
  %v1017 = vunpack.c.l.b16 %v158
  %v1018 = vunpack.c.l.b16 %v159
  %v1019 = vunpack.c.l.b16 %v160
  %v1020 = vunpack.c.l.b16 %v161
  %v1021 = vunpack.c.l.b16 %v162
  %v1022 = vunpack.c.l.b16 %v163
  %v1023 = vunpack.c.l.b16 %v164
  %v1024 = vunpack.c.l.b16 %v165
  %v1025 = vunpack.c.l.b16 %v166
  %v1026 = vunpack.c.l.b16 %v167
  %v1027 = vunpack.c.l.b16 %v168
  %v1028 = vunpack.c.l.b16 %v169
  %v1029 = vunpack.c.l.b16 %v170
  %v1030 = vunpack.c.l.b16 %v171
  %v1031 = vunpack.c.l.b16 %v172
  %v1032 = vunpack.c.l.b16 %v173
  %v1033 = vunpack.c.l.b16 %v174
  %v1034 = vunpack.c.l.b16 %v175
  %v1035 = vunpack.c.l.b16 %v176
  %v1036 = vunpack.c.l.b16 %v177
  %v1037 = vunpack.c.l.b16 %v178
  %v1038 = vunpack.c.l.b16 %v179
  %v1039 = vunpack.c.l.b16 %v180
  %v1040 = vunpack.c.l.b16 %v181
  %v1041 = vunpack.c.l.b16 %v182
  %v1042 = vunpack.c.l.b16 %v183
  %v1043 = vunpack.c.l.b16 %v184
  %v1044 = vunpack.c.l.b16 %v185
  %v1045 = vunpack.c.l.b16 %v186
  %v1046 = vunpack.c.l.b16 %v187
  %v1047 = vunpack.c.l.b16 %v188
  %v1048 = vunpack.c.l.b16 %v189
  %v1049 = vunpack.c.l.b16 %v190
  %v1050 = vunpack.c.l.b16 %v191
  %v1051 = vunpack.c.l.b16 %v192
  %v1052 = vunpack.c.l.b16 %v193
  %v1053 = vunpack.c.l.b16 %v194
  %v1054 = vunpack.c.l.b16 %v195
  %v1055 = vunpack.c.l.b16 %v196
  %v1056 = vunpack.c.l.b16 %v197
  %v1057 = vunpack.c.l.b16 %v198
  %v1058 = vunpack.c.l.b16 %v199
  %v1059 = vunpack.c.l.b16 %v200
  %v1060 = vunpack.c.l.b16 %v201
  %v1061 = vunpack.c.l.b16 %v202
  %v1062 = vunpack.c.l.b16 %v203
  %v1063 = vunpack.c.l.b16 %v204
  %v1064 = vunpack.c.l.b16 %v205
  %v1065 = vunpack.c.l.b16 %v206
  %v1066 = vunpack.c.l.b16 %v207
  %v1067 = vunpack.c.l.b16 %v208
  %v1068 = vunpack.c.l.b16 %v209
  %v1069 = vunpack.c.l.b16 %v210
  %v1070 = vunpack.c.l.b16 %v211
  %v1071 = vunpack.c.l.b16 %v212
  %v1072 = vunpack.c.l.b16 %v213
  %v1073 = vunpack.c.l.b16 %v214
  %v1074 = vunpack.c.l.b16 %v215
  %v1075 = vunpack.c.l.b16 %v216
  %v1076 = vunpack.c.l.b16 %v217
  %v1077 = vunpack.c.l.b16 %v218
  %v1078 = vunpack.c.l.b16 %v219
  %v1079 = vunpack.c.l.b16 %v220
  %v1080 = vunpack.c.l.b16 %v221
  %v1081 = vunpack.c.l.b16 %v222
  %v1082 = vunpack.c.l.b16 %v223
  %v1083 = vunpack.c.l.b16 %v224
  %v1084 = vunpack.c.l.b16 %v225
  %v1085 = vunpack.c.l.b16 %v226
  %v1086 = vunpack.c.l.b16 %v227
  %v1087 = vunpack.c.l.b16 %v228
  %v1088 = vunpack.c.l.b16 %v229
  %v1089 = vunpack.c.l.b16 %v230
  %v1090 = vunpack.c.l.b16 %v231
  %v1091 = vunpack.c.l.b16 %v232
  %v1092 = vunpack.c.l.b16 %v233
  %v1093 = vunpack.c.l.b16 %v234
  %v1094 = vunpack.c.l.b16 %v235
  %v1095 = vunpack.c.l.b16 %v236
  %v1096 = vunpack.c.l.b16 %v237
  %v1097 = vunpack.c.l.b16 %v238
  %v1098 = vunpack.c.l.b16 %v239
  %v1099 = vunpack.c.l.b16 %v240
  %v1100 = vunpack.c.l.b16 %v241
  %v1101 = vunpack.c.l.b16 %v242
  %v1102 = vunpack.c.l.b16 %v243
  %v1103 = vunpack.c.l.b16 %v244
  %v1104 = vunpack.c.l.b16 %v245
  %v1105 = vunpack.c.l.b16 %v246
  %v1106 = vunpack.c.l.b16 %v247
  %v1107 = vunpack.c.l.b16 %v248
  %v1108 = vunpack.c.l.b16 %v249
  %v1109 = vunpack.c.l.b16 %v250
  %v1110 = vunpack.c.l.b16 %v251
  %v1111 = vunpack.c.l.b16 %v252
  %v1112 = vunpack.c.l.b16 %v253
  %v1113 = vunpack.c.l.b16 %v254
  %v1114 = vunpack.c.l.b16 %v255
  %v1115 = vunpack.c.l.b16 %v256
  %v1116 = vunpack.c.l.b16 %v257
  %v1117 = vunpack.c.l.b16 %v258
  %v1118 = vunpack.c.l.b16 %v259
  %v1119 = vunpack.c.l.b16 %v260
  %v1120 = vunpack.c.l.b16 %v261
  %v1121 = vunpack.c.l.b16 %v262
  %v1122 = vunpack.c.l.b16 %v263
  %v1123 = vunpack.c.l.b16 %v264
  %v1124 = vunpack.c.l.b16 %v265
  %v1125 = vunpack.c.l.b16 %v266
  %v1126 = vunpack.c.l.b16 %v267
  %v1127 = vunpack.c.l.b16 %v268
  %v1128 = vunpack.c.l.b16 %v269
  %v1129 = vunpack.c.l.b16 %v270
  %v1130 = vunpack.c.l.b16 %v271
  %v1131 = vunpack.c.l.b16 %v272
  %v1132 = vunpack.c.l.b16 %v273
  %v1133 = vunpack.c.l.b16 %v274
  %v1134 = vunpack.c.l.b16 %v275
  %v1135 = vunpack.c.l.b16 %v276
  %v1136 = vunpack.c.l.b16 %v277
  %v1137 = vunpack.c.l.b16 %v278
  %v1138 = vunpack.c.l.b16 %v279
  %v1139 = vunpack.c.l.b16 %v280
  %v1140 = vunpack.c.l.b16 %v281
  %v1141 = vunpack.c.l.b16 %v282
  %v1142 = vunpack.c.l.b16 %v283
  %v1143 = vunpack.c.l.b16 %v284
  %v1144 = vunpack.c.l.b16 %v285
  %v1145 = vunpack.c.l.b16 %v286
  %v1146 = vunpack.c.l.b16 %v287
  %v1147 = vunpack.c.l.b16 %v288
  %v1148 = vunpack.c.l.b16 %v289
  %v1149 = vunpack.c.l.b16 %v290
  %v1150 = vunpack.c.l.b16 %v291
  %v1151 = vunpack.c.l.b16 %v292
  %v1152 = vunpack.c.l.b16 %v293
  %v1153 = vunpack.c.l.b16 %v294
  %v1154 = vunpack.c.l.b16 %v295
  %v1155 = vunpack.c.l.b16 %v296
  %v1156 = vunpack.c.l.b16 %v297
  %v1157 = vunpack.c.l.b16 %v298
  %v1158 = vunpack.c.l.b16 %v299
  %v1159 = vunpack.c.l.b16 %v300
  %v1160 = vunpack.c.l.b16 %v301
  %v1161 = vunpack.c.l.b16 %v302
  %v1162 = vunpack.c.l.b16 %v303
  %v1163 = vunpack.c.l.b16 %v304
  %v1164 = vunpack.c.l.b16 %v305
  %v1165 = vunpack.c.l.b16 %v306
  %v1166 = vunpack.c.l.b16 %v307
  %v1167 = vunpack.c.l.b16 %v308
  %v1168 = vunpack.c.l.b16 %v309
  %v1169 = vunpack.c.l.b16 %v310
  %v1170 = vunpack.c.l.b16 %v311
  %v1171 = vunpack.c.l.b16 %v312
  %v1172 = vunpack.c.l.b16 %v313
  %v1173 = vunpack.c.l.b16 %v314
  %v1174 = vunpack.c.l.b16 %v315
  %v1175 = vunpack.c.l.b16 %v316
  %v1176 = vunpack.c.l.b16 %v317
  %v1177 = vunpack.c.l.b16 %v318
  %v1178 = vunpack.c.l.b16 %v319
  %v1179 = vunpack.c.l.b16 %v320
  %v1180 = vunpack.c.l.b16 %v321
  %v1181 = vunpack.c.l.b16 %v322
  %v1182 = vunpack.c.l.b16 %v323
  %v1183 = vunpack.c.l.b16 %v324
  %v1184 = vunpack.c.l.b16 %v325
  %v1185 = vunpack.c.l.b16 %v326
  %v1186 = vunpack.c.l.b16 %v327
  %v1187 = vunpack.c.l.b16 %v328
  %v1188 = vunpack.c.l.b16 %v329
  %v1189 = vunpack.c.l.b16 %v330
  %v1190 = vunpack.c.l.b16 %v331
  %v1191 = vunpack.c.l.b16 %v332
  %v1192 = vunpack.c.l.b16 %v333
  %v1193 = vunpack.c.l.b16 %v334
  %v1194 = vunpack.c.l.b16 %v335
  %v1195 = vunpack.c.l.b16 %v336
  %v1196 = vunpack.c.l.b16 %v337
  %v1197 = vunpack.c.l.b16 %v338
  %v1198 = vunpack.c.l.b16 %v339
  %v1199 = vunpack.c.l.b16 %v340
  %v1200 = vunpack.c.l.b16 %v341
  %v1201 = vunpack.c.l.b16 %v342
  %v1202 = vunpack.c.l.b16 %v343
  %v1203 = vunpack.c.l.b16 %v344
  %v1204 = vunpack.c.l.b16 %v345
  %v1205 = vunpack.c.l.b16 %v346
  %v1206 = vunpack.c.l.b16 %v347
  %v1207 = vunpack.c.l.b16 %v348
  %v1208 = vunpack.c.l.b16 %v349
  %v1209 = vunpack.c.l.b16 %v350
  %v1210 = vunpack.c.l.b16 %v351
  %v1211 = vunpack.c.l.b16 %v352
  %v1212 = vunpack.c.l.b16 %v353
  %v1213 = vunpack.c.l.b16 %v354
  %v1214 = vunpack.c.l.b16 %v355
  %v1215 = vunpack.c.l.b16 %v356
  %v1216 = vunpack.c.l.b16 %v357
  %v1217 = vunpack.c.l.b16 %v358
  %v1218 = vunpack.c.l.b16 %v359
  %v1219 = vunpack.c.l.b16 %v360
  %v1220 = vunpack.c.l.b16 %v361
  %v1221 = vunpack.c.l.b16 %v362
  %v1222 = vunpack.c.l.b16 %v363
  %v1223 = vunpack.c.l.b16 %v364
  %v1224 = vunpack.c.l.b16 %v365
  %v1225 = vunpack.c.l.b16 %v366
  %v1226 = vunpack.c.l.b16 %v367
  %v1227 = vunpack.c.l.b16 %v368
  %v1228 = vunpack.c.l.b16 %v369
  %v1229 = vunpack.c.l.b16 %v370
  %v1230 = vunpack.c.l.b16 %v371
  %v1231 = vunpack.c.l.b16 %v372
  %v1232 = vunpack.c.l.b16 %v373
  %v1233 = vunpack.c.l.b16 %v374
  %v1234 = vunpack.c.l.b16 %v375
  %v1235 = vunpack.c.l.b16 %v376
  %v1236 = vunpack.c.l.b16 %v377
  %v1237 = vunpack.c.l.b16 %v378
  %v1238 = vunpack.c.l.b16 %v379
  %v1239 = vunpack.c.l.b16 %v380
  %v1240 = vunpack.c.l.b16 %v381
  %v1241 = vunpack.c.l.b16 %v382
  %v1242 = vunpack.c.l.b16 %v383
  %v1243 = vunpack.c.l.b16 %v384
  %v1244 = vunpack.c.l.b16 %v385
  %v1245 = vunpack.c.l.b16 %v386
  %v1246 = vunpack.c.l.b16 %v387
  %v1247 = vunpack.c.l.b16 %v388
  %v1248 = vunpack.c.l.b16 %v389
  %v1249 = vunpack.c.l.b16 %v390
  %v1250 = vunpack.c.l.b16 %v391
  %v1251 = vunpack.c.l.b16 %v392
  %v1252 = vunpack.c.l.b16 %v393
  %v1253 = vunpack.c.l.b16 %v394
  %v1254 = vunpack.c.l.b16 %v395
  %v1255 = vunpack.c.l.b16 %v396
  %v1256 = vunpack.c.l.b16 %v397
  %v1257 = vunpack.c.l.b16 %v398
  %v1258 = vunpack.c.l.b16 %v399
  %v1259 = vunpack.c.l.b16 %v400
  %v1260 = vunpack.c.l.b16 %v401
  %v1261 = vunpack.c.l.b16 %v402
  %v1262 = vunpack.c.l.b16 %v403
  %v1263 = vunpack.c.l.b16 %v404
  %v1264 = vunpack.c.l.b16 %v405
  %v1265 = vunpack.c.l.b16 %v406
  %v1266 = vunpack.c.l.b16 %v407
  %v1267 = vunpack.c.l.b16 %v408
  %v1268 = vunpack.c.l.b16 %v409
  %v1269 = vunpack.c.l.b16 %v410
  %v1270 = vunpack.c.l.b16 %v411
  %v1271 = vunpack.c.l.b16 %v412
  %v1272 = vunpack.c.l.b16 %v413
  %v1273 = vunpack.c.l.b16 %v414
  %v1274 = vunpack.c.l.b16 %v415
  %v1275 = vunpack.c.l.b16 %v416
  %v1276 = vunpack.c.l.b16 %v417
  %v1277 = vunpack.c.l.b16 %v418
  %v1278 = vunpack.c.l.b16 %v419
  %v1279 = vunpack.c.l.b16 %v420
  %v1280 = vunpack.c.l.b16 %v421
  %v1281 = vunpack.c.l.b16 %v422
  %v1282 = vpack.c.b16 %v899, %v898
  %v1283 = vpack.c.b16 %v901, %v900
  %v1284 = vpack.c.b16 %v903, %v902
  %v1285 = vpack.c.b16 %v905, %v904
  %v1286 = vpack.c.b16 %v907, %v906
  %v1287 = vpack.c.b16 %v909, %v908
  %v1288 = vpack.c.b16 %v911, %v910
  %v1289 = vpack.c.b16 %v913, %v912
  %v1290 = vpack.c.b16 %v915, %v914
  %v1291 = vpack.c.b16 %v917, %v916
  %v1292 = vpack.c.b16 %v919, %v918
  %v1293 = vpack.c.b16 %v921, %v920
  %v1294 = vpack.c.b16 %v923, %v922
  %v1295 = vpack.c.b16 %v925, %v924
  %v1296 = vpack.c.b16 %v927, %v926
  %v1297 = vpack.c.b16 %v929, %v928
  %v1298 = vpack.c.b16 %v931, %v930
  %v1299 = vpack.c.b16 %v933, %v932
  %v1300 = vpack.c.b16 %v935, %v934
  %v1301 = vpack.c.b16 %v937, %v936
  %v1302 = vpack.c.b16 %v939, %v938
  %v1303 = vpack.c.b16 %v941, %v940
  %v1304 = vpack.c.b16 %v943, %v942
  %v1305 = vpack.c.b16 %v945, %v944
  %v1306 = vpack.c.b16 %v947, %v946
  %v1307 = vpack.c.b16 %v949, %v948
  %v1308 = vpack.c.b16 %v951, %v950
  %v1309 = vpack.c.b16 %v953, %v952
  %v1310 = vpack.c.b16 %v955, %v954
  %v1311 = vpack.c.b16 %v957, %v956
  %v1312 = vpack.c.b16 %v959, %v958
  %v1313 = vpack.c.b16 %v961, %v960
  %v1314 = vpack.c.b16 %v963, %v962
  %v1315 = vpack.c.b16 %v965, %v964
  %v1316 = vpack.c.b16 %v967, %v966
  %v1317 = vpack.c.b16 %v969, %v968
  %v1318 = vpack.c.b16 %v971, %v970
  %v1319 = vpack.c.b16 %v973, %v972
  %v1320 = vpack.c.b16 %v975, %v974
  %v1321 = vpack.c.b16 %v977, %v976
  %v1322 = vpack.c.b16 %v979, %v978
  %v1323 = vpack.c.b16 %v981, %v980
  %v1324 = vpack.c.b16 %v983, %v982
  %v1325 = vpack.c.b16 %v985, %v984
  %v1326 = vpack.c.b16 %v987, %v986
  %v1327 = vpack.c.b16 %v989, %v988
  %v1328 = vpack.c.b16 %v991, %v990
  %v1329 = vpack.c.b16 %v993, %v992
  %v1330 = vpack.c.b16 %v995, %v994
  %v1331 = vpack.c.b16 %v997, %v996
  %v1332 = vpack.c.b16 %v999, %v998
  %v1333 = vpack.c.b16 %v1001, %v1000
  %v1334 = vpack.c.b16 %v1003, %v1002
  %v1335 = vpack.c.b16 %v1005, %v1004
  %v1336 = vpack.c.b16 %v1007, %v1006
  %v1337 = vpack.c.b16 %v1009, %v1008
  %v1338 = vpack.c.b16 %v1011, %v1010
  %v1339 = vpack.c.b16 %v1013, %v1012
  %v1340 = vpack.c.b16 %v1015, %v1014
  %v1341 = vpack.c.b16 %v1017, %v1016
  %v1342 = vpack.c.b16 %v1019, %v1018
  %v1343 = vpack.c.b16 %v1021, %v1020
  %v1344 = vpack.c.b16 %v1023, %v1022
  %v1345 = vpack.c.b16 %v1025, %v1024
  %v1346 = vpack.c.b16 %v1027, %v1026
  %v1347 = vpack.c.b16 %v1029, %v1028
  %v1348 = vpack.c.b16 %v1031, %v1030
  %v1349 = vpack.c.b16 %v1033, %v1032
  %v1350 = vpack.c.b16 %v1035, %v1034
  %v1351 = vpack.c.b16 %v1037, %v1036
  %v1352 = vpack.c.b16 %v1039, %v1038
  %v1353 = vpack.c.b16 %v1041, %v1040
  %v1354 = vpack.c.b16 %v1043, %v1042
  %v1355 = vpack.c.b16 %v1045, %v1044
  %v1356 = vpack.c.b16 %v1047, %v1046
  %v1357 = vpack.c.b16 %v1049, %v1048
  %v1358 = vpack.c.b16 %v1051, %v1050
  %v1359 = vpack.c.b16 %v1053, %v1052
  %v1360 = vpack.c.b16 %v1055, %v1054
  %v1361 = vpack.c.b16 %v1057, %v1056
  %v1362 = vpack.c.b16 %v1059, %v1058
  %v1363 = vpack.c.b16 %v1061, %v1060
  %v1364 = vpack.c.b16 %v1063, %v1062
  %v1365 = vpack.c.b16 %v1065, %v1064
  %v1366 = vpack.c.b16 %v1067, %v1066
  %v1367 = vpack.c.b16 %v1069, %v1068
  %v1368 = vpack.c.b16 %v1071, %v1070
  %v1369 = vpack.c.b16 %v1073, %v1072
  %v1370 = vpack.c.b16 %v1075, %v1074
  %v1371 = vpack.c.b16 %v1077, %v1076
  %v1372 = vpack.c.b16 %v1079, %v1078
  %v1373 = vpack.c.b16 %v1081, %v1080
  %v1374 = vpack.c.b16 %v1083, %v1082
  %v1375 = vpack.c.b16 %v1085, %v1084
  %v1376 = vpack.c.b16 %v1087, %v1086
  %v1377 = vpack.c.b16 %v1089, %v1088
  %v1378 = vpack.c.b16 %v1091, %v1090
  %v1379 = vpack.c.b16 %v1093, %v1092
  %v1380 = vpack.c.b16 %v1095, %v1094
  %v1381 = vpack.c.b16 %v1097, %v1096
  %v1382 = vpack.c.b16 %v1099, %v1098
  %v1383 = vpack.c.b16 %v1101, %v1100
  %v1384 = vpack.c.b16 %v1103, %v1102
  %v1385 = vpack.c.b16 %v1105, %v1104
  %v1386 = vpack.c.b16 %v1107, %v1106
  %v1387 = vpack.c.b16 %v1109, %v1108
  %v1388 = vpack.c.b16 %v1111, %v1110
  %v1389 = vpack.c.b16 %v1113, %v1112
  %v1390 = vpack.c.b16 %v1115, %v1114
  %v1391 = vpack.c.b16 %v1117, %v1116
  %v1392 = vpack.c.b16 %v1119, %v1118
  %v1393 = vpack.c.b16 %v1121, %v1120
  %v1394 = vpack.c.b16 %v1123, %v1122
  %v1395 = vpack.c.b16 %v1125, %v1124
  %v1396 = vpack.c.b16 %v1127, %v1126
  %v1397 = vpack.c.b16 %v1129, %v1128
  %v1398 = vpack.c.b16 %v1131, %v1130
  %v1399 = vpack.c.b16 %v1133, %v1132
  %v1400 = vpack.c.b16 %v1135, %v1134
  %v1401 = vpack.c.b16 %v1137, %v1136
  %v1402 = vpack.c.b16 %v1139, %v1138
  %v1403 = vpack.c.b16 %v1141, %v1140
  %v1404 = vpack.c.b16 %v1143, %v1142
  %v1405 = vpack.c.b16 %v1145, %v1144
  %v1406 = vpack.c.b16 %v1147, %v1146
  %v1407 = vpack.c.b16 %v1149, %v1148
  %v1408 = vpack.c.b16 %v1151, %v1150
  %v1409 = vpack.c.b16 %v1153, %v1152
  %v1410 = vpack.c.b16 %v1155, %v1154
  %v1411 = vpack.c.b16 %v1157, %v1156
  %v1412 = vpack.c.b16 %v1159, %v1158
  %v1413 = vpack.c.b16 %v1161, %v1160
  %v1414 = vpack.c.b16 %v1163, %v1162
  %v1415 = vpack.c.b16 %v1165, %v1164
  %v1416 = vpack.c.b16 %v1167, %v1166
  %v1417 = vpack.c.b16 %v1169, %v1168
  %v1418 = vpack.c.b16 %v1171, %v1170
  %v1419 = vpack.c.b16 %v1173, %v1172
  %v1420 = vpack.c.b16 %v1175, %v1174
  %v1421 = vpack.c.b16 %v1177, %v1176
  %v1422 = vpack.c.b16 %v1179, %v1178
  %v1423 = vpack.c.b16 %v1181, %v1180
  %v1424 = vpack.c.b16 %v1183, %v1182
  %v1425 = vpack.c.b16 %v1185, %v1184
  %v1426 = vpack.c.b16 %v1187, %v1186
  %v1427 = vpack.c.b16 %v1189, %v1188
  %v1428 = vpack.c.b16 %v1191, %v1190
  %v1429 = vpack.c.b16 %v1193, %v1192
  %v1430 = vpack.c.b16 %v1195, %v1194
  %v1431 = vpack.c.b16 %v1197, %v1196
  %v1432 = vpack.c.b16 %v1199, %v1198
  %v1433 = vpack.c.b16 %v1201, %v1200
  %v1434 = vpack.c.b16 %v1203, %v1202
  %v1435 = vpack.c.b16 %v1205, %v1204
  %v1436 = vpack.c.b16 %v1207, %v1206
  %v1437 = vpack.c.b16 %v1209, %v1208
  %v1438 = vpack.c.b16 %v1211, %v1210
  %v1439 = vpack.c.b16 %v1213, %v1212
  %v1440 = vpack.c.b16 %v1215, %v1214
  %v1441 = vpack.c.b16 %v1217, %v1216
  %v1442 = vpack.c.b16 %v1219, %v1218
  %v1443 = vpack.c.b16 %v1221, %v1220
  %v1444 = vpack.c.b16 %v1223, %v1222
  %v1445 = vpack.c.b16 %v1225, %v1224
  %v1446 = vpack.c.b16 %v1227, %v1226
  %v1447 = vpack.c.b16 %v1229, %v1228
  %v1448 = vpack.c.b16 %v1231, %v1230
  %v1449 = vpack.c.b16 %v1233, %v1232
  %v1450 = vpack.c.b16 %v1235, %v1234
  %v1451 = vpack.c.b16 %v1237, %v1236
  %v1452 = vpack.c.b16 %v1239, %v1238
  %v1453 = vpack.c.b16 %v1241, %v1240
  %v1454 = vpack.c.b16 %v1243, %v1242
  %v1455 = vpack.c.b16 %v1245, %v1244
  %v1456 = vpack.c.b16 %v1247, %v1246
  %v1457 = vpack.c.b16 %v1249, %v1248
  %v1458 = vpack.c.b16 %v1251, %v1250
  %v1459 = vpack.c.b16 %v1253, %v1252
  %v1460 = vpack.c.b16 %v1255, %v1254
  %v1461 = vpack.c.b16 %v1257, %v1256
  %v1462 = vpack.c.b16 %v1259, %v1258
  %v1463 = vpack.c.b16 %v1261, %v1260
  %v1464 = vpack.c.b16 %v1263, %v1262
  %v1465 = vpack.c.b16 %v1265, %v1264
  %v1466 = vpack.c.b16 %v1267, %v1266
  %v1467 = vpack.c.b16 %v1269, %v1268
  %v1468 = vpack.c.b16 %v1271, %v1270
  %v1469 = vpack.c.b16 %v1273, %v1272
  %v1470 = vpack.c.b16 %v1275, %v1274
  %v1471 = vpack.c.b16 %v1277, %v1276
  %v1472 = vpack.c.b16 %v1279, %v1278
  %v1473 = vpack.c.b16 %v1281, %v1280
  %1666 = vmatprep.subr.bf16.mxu0 0
  %1667 = vmatpush1.bf16.msra.mxu0 %v1289
  %1668 = vmatprep.subr.bf16.mxu0 0
  %1669 = vmatpush1.bf16.msra.mxu0 %v1288
  %1670 = vmatprep.subr.bf16.mxu0 0
  %1671 = vmatpush1.bf16.msra.mxu0 %v1287
  %1672 = vmatprep.subr.bf16.mxu0 0
  %1673 = vmatpush1.bf16.msra.mxu0 %v1286
  %1674 = vmatprep.subr.bf16.mxu0 0
  %1675 = vmatpush1.bf16.msra.mxu0 %v1285
  %1676 = vmatprep.subr.bf16.mxu0 0
  %1677 = vmatpush1.bf16.msra.mxu0 %v1284
  %1678 = vmatprep.subr.bf16.mxu0 0
  %1679 = vmatpush1.bf16.msra.mxu0 %v1283
  %1680 = vmatprep.subr.bf16.mxu0 0
  %1681 = vmatpush1.bf16.msra.mxu0 %v1282
  %1682 = vmatprep.subr.bf16.mxu0 0
  %1683 = vmatpush2.bf16.msra.mxu0 %v1297
  %1684 = vmatprep.subr.bf16.mxu0 0
  %1685 = vmatpush2.bf16.msra.mxu0 %v1296
  %1686 = vmatprep.subr.bf16.mxu0 0
  %1687 = vmatpush2.bf16.msra.mxu0 %v1295
  %1688 = vmatprep.subr.bf16.mxu0 0
  %1689 = vmatpush2.bf16.msra.mxu0 %v1294
  %1690 = vmatprep.subr.bf16.mxu0 0
  %1691 = vmatpush2.bf16.msra.mxu0 %v1293
  %1692 = vmatprep.subr.bf16.mxu0 0
  %1693 = vmatpush2.bf16.msra.mxu0 %v1292
  %1694 = vmatprep.subr.bf16.mxu0 0
  %1695 = vmatpush2.bf16.msra.mxu0 %v1291
  %1696 = vmatprep.subr.bf16.mxu0 0
  %1697 = vmatpush2.bf16.msra.mxu0 %v1290
  %1698 = vmatprep.mubr.bf16.mxu0 %v467
  %1699 = vmatmul.mubr.bf16.gmra.mxu0 %v466
  %v1700 = vpop.f32.mrf.mxu0
  %v1701 = vadd.f32 %v428, %v1700
  %v1702 = vpop.f32.mrf.mxu0
  %v1703 = vpop.f32.mrf.mxu0
  %v1704 = vpop.f32.mrf.mxu0
  %1705 = vdwg.mxu0
  %1706 = vmatprep.subr.bf16.mxu0 0
  %1707 = vmatpush1.bf16.msra.mxu0 %v1305
  %1708 = vmatprep.subr.bf16.mxu0 0
  %1709 = vmatpush1.bf16.msra.mxu0 %v1304
  %1710 = vmatprep.subr.bf16.mxu0 0
  %1711 = vmatpush1.bf16.msra.mxu0 %v1303
  %1712 = vmatprep.subr.bf16.mxu0 0
  %1713 = vmatpush1.bf16.msra.mxu0 %v1302
  %1714 = vmatprep.subr.bf16.mxu0 0
  %1715 = vmatpush1.bf16.msra.mxu0 %v1301
  %1716 = vmatprep.subr.bf16.mxu0 0
  %1717 = vmatpush1.bf16.msra.mxu0 %v1300
  %1718 = vmatprep.subr.bf16.mxu0 0
  %1719 = vmatpush1.bf16.msra.mxu0 %v1299
  %1720 = vmatprep.subr.bf16.mxu0 0
  %1721 = vmatpush1.bf16.msra.mxu0 %v1298
  %1722 = vmatprep.subr.bf16.mxu0 0
  %1723 = vmatpush2.bf16.msra.mxu0 %v1313
  %1724 = vmatprep.subr.bf16.mxu0 0
  %1725 = vmatpush2.bf16.msra.mxu0 %v1312
  %1726 = vmatprep.subr.bf16.mxu0 0
  %1727 = vmatpush2.bf16.msra.mxu0 %v1311
  %1728 = vmatprep.subr.bf16.mxu0 0
  %1729 = vmatpush2.bf16.msra.mxu0 %v1310
  %1730 = vmatprep.subr.bf16.mxu0 0
  %1731 = vmatpush2.bf16.msra.mxu0 %v1309
  %1732 = vmatprep.subr.bf16.mxu0 0
  %1733 = vmatpush2.bf16.msra.mxu0 %v1308
  %1734 = vmatprep.subr.bf16.mxu0 0
  %1735 = vmatpush2.bf16.msra.mxu0 %v1307
  %1736 = vmatprep.subr.bf16.mxu0 0
  %1737 = vmatpush2.bf16.msra.mxu0 %v1306
  %1738 = vmatprep.mubr.bf16.mxu0 %v469
  %1739 = vmatmul.mubr.bf16.gmra.mxu0 %v468
  %v1740 = vpop.f32.mrf.mxu0
  %v1741 = vadd.f32 %v1701, %v1740
  %v1742 = vpop.f32.mrf.mxu0
  %v1743 = vpop.f32.mrf.mxu0
  %v1744 = vpop.f32.mrf.mxu0
  %1745 = vdwg.mxu0
  %1746 = vmatprep.subr.bf16.mxu0 0
  %1747 = vmatpush1.bf16.msra.mxu0 %v1321
  %1748 = vmatprep.subr.bf16.mxu0 0
  %1749 = vmatpush1.bf16.msra.mxu0 %v1320
  %1750 = vmatprep.subr.bf16.mxu0 0
  %1751 = vmatpush1.bf16.msra.mxu0 %v1319
  %1752 = vmatprep.subr.bf16.mxu0 0
  %1753 = vmatpush1.bf16.msra.mxu0 %v1318
  %1754 = vmatprep.subr.bf16.mxu0 0
  %1755 = vmatpush1.bf16.msra.mxu0 %v1317
  %1756 = vmatprep.subr.bf16.mxu0 0
  %1757 = vmatpush1.bf16.msra.mxu0 %v1316
  %1758 = vmatprep.subr.bf16.mxu0 0
  %1759 = vmatpush1.bf16.msra.mxu0 %v1315
  %1760 = vmatprep.subr.bf16.mxu0 0
  %1761 = vmatpush1.bf16.msra.mxu0 %v1314
  %1762 = vmatprep.subr.bf16.mxu0 0
  %1763 = vmatpush2.bf16.msra.mxu0 %v1329
  %1764 = vmatprep.subr.bf16.mxu0 0
  %1765 = vmatpush2.bf16.msra.mxu0 %v1328
  %1766 = vmatprep.subr.bf16.mxu0 0
  %1767 = vmatpush2.bf16.msra.mxu0 %v1327
  %1768 = vmatprep.subr.bf16.mxu0 0
  %1769 = vmatpush2.bf16.msra.mxu0 %v1326
  %1770 = vmatprep.subr.bf16.mxu0 0
  %1771 = vmatpush2.bf16.msra.mxu0 %v1325
  %1772 = vmatprep.subr.bf16.mxu0 0
  %1773 = vmatpush2.bf16.msra.mxu0 %v1324
  %1774 = vmatprep.subr.bf16.mxu0 0
  %1775 = vmatpush2.bf16.msra.mxu0 %v1323
  %1776 = vmatprep.subr.bf16.mxu0 0
  %1777 = vmatpush2.bf16.msra.mxu0 %v1322
  %1778 = vmatprep.mubr.bf16.mxu0 %v471
  %1779 = vmatmul.mubr.bf16.gmra.mxu0 %v470
  %v1780 = vpop.f32.mrf.mxu0
  %v1781 = vadd.f32 %v1741, %v1780
  %v1782 = vpop.f32.mrf.mxu0
  %v1783 = vpop.f32.mrf.mxu0
  %v1784 = vpop.f32.mrf.mxu0
  %1785 = vdwg.mxu0
  %1786 = vmatprep.subr.bf16.mxu0 0
  %1787 = vmatpush1.bf16.msra.mxu0 %v1337
  %1788 = vmatprep.subr.bf16.mxu0 0
  %1789 = vmatpush1.bf16.msra.mxu0 %v1336
  %1790 = vmatprep.subr.bf16.mxu0 0
  %1791 = vmatpush1.bf16.msra.mxu0 %v1335
  %1792 = vmatprep.subr.bf16.mxu0 0
  %1793 = vmatpush1.bf16.msra.mxu0 %v1334
  %1794 = vmatprep.subr.bf16.mxu0 0
  %1795 = vmatpush1.bf16.msra.mxu0 %v1333
  %1796 = vmatprep.subr.bf16.mxu0 0
  %1797 = vmatpush1.bf16.msra.mxu0 %v1332
  %1798 = vmatprep.subr.bf16.mxu0 0
  %1799 = vmatpush1.bf16.msra.mxu0 %v1331
  %1800 = vmatprep.subr.bf16.mxu0 0
  %1801 = vmatpush1.bf16.msra.mxu0 %v1330
  %1802 = vmatprep.subr.bf16.mxu0 0
  %1803 = vmatpush2.bf16.msra.mxu0 %v1345
  %1804 = vmatprep.subr.bf16.mxu0 0
  %1805 = vmatpush2.bf16.msra.mxu0 %v1344
  %1806 = vmatprep.subr.bf16.mxu0 0
  %1807 = vmatpush2.bf16.msra.mxu0 %v1343
  %1808 = vmatprep.subr.bf16.mxu0 0
  %1809 = vmatpush2.bf16.msra.mxu0 %v1342
  %1810 = vmatprep.subr.bf16.mxu0 0
  %1811 = vmatpush2.bf16.msra.mxu0 %v1341
  %1812 = vmatprep.subr.bf16.mxu0 0
  %1813 = vmatpush2.bf16.msra.mxu0 %v1340
  %1814 = vmatprep.subr.bf16.mxu0 0
  %1815 = vmatpush2.bf16.msra.mxu0 %v1339
  %1816 = vmatprep.subr.bf16.mxu0 0
  %1817 = vmatpush2.bf16.msra.mxu0 %v1338
  %1818 = vmatprep.mubr.bf16.mxu0 %v473
  %1819 = vmatmul.mubr.bf16.gmra.mxu0 %v472
  %v1820 = vpop.f32.mrf.mxu0
  %v1821 = vadd.f32 %v1781, %v1820
  %v1822 = vpop.f32.mrf.mxu0
  %v1823 = vpop.f32.mrf.mxu0
  %v1824 = vpop.f32.mrf.mxu0
  %1825 = vdwg.mxu0
  %1826 = vmatprep.subr.bf16.mxu0 0
  %1827 = vmatpush1.bf16.msra.mxu0 %v1353
  %1828 = vmatprep.subr.bf16.mxu0 0
  %1829 = vmatpush1.bf16.msra.mxu0 %v1352
  %1830 = vmatprep.subr.bf16.mxu0 0
  %1831 = vmatpush1.bf16.msra.mxu0 %v1351
  %1832 = vmatprep.subr.bf16.mxu0 0
  %1833 = vmatpush1.bf16.msra.mxu0 %v1350
  %1834 = vmatprep.subr.bf16.mxu0 0
  %1835 = vmatpush1.bf16.msra.mxu0 %v1349
  %1836 = vmatprep.subr.bf16.mxu0 0
  %1837 = vmatpush1.bf16.msra.mxu0 %v1348
  %1838 = vmatprep.subr.bf16.mxu0 0
  %1839 = vmatpush1.bf16.msra.mxu0 %v1347
  %1840 = vmatprep.subr.bf16.mxu0 0
  %1841 = vmatpush1.bf16.msra.mxu0 %v1346
  %1842 = vmatprep.subr.bf16.mxu0 0
  %1843 = vmatpush2.bf16.msra.mxu0 %v1361
  %1844 = vmatprep.subr.bf16.mxu0 0
  %1845 = vmatpush2.bf16.msra.mxu0 %v1360
  %1846 = vmatprep.subr.bf16.mxu0 0
  %1847 = vmatpush2.bf16.msra.mxu0 %v1359
  %1848 = vmatprep.subr.bf16.mxu0 0
  %1849 = vmatpush2.bf16.msra.mxu0 %v1358
  %1850 = vmatprep.subr.bf16.mxu0 0
  %1851 = vmatpush2.bf16.msra.mxu0 %v1357
  %1852 = vmatprep.subr.bf16.mxu0 0
  %1853 = vmatpush2.bf16.msra.mxu0 %v1356
  %1854 = vmatprep.subr.bf16.mxu0 0
  %1855 = vmatpush2.bf16.msra.mxu0 %v1355
  %1856 = vmatprep.subr.bf16.mxu0 0
  %1857 = vmatpush2.bf16.msra.mxu0 %v1354
  %1858 = vmatprep.mubr.bf16.mxu0 %v475
  %1859 = vmatmul.mubr.bf16.gmra.mxu0 %v474
  %v1860 = vpop.f32.mrf.mxu0
  %v1861 = vadd.f32 %v1821, %v1860
  %v1862 = vpop.f32.mrf.mxu0
  %v1863 = vpop.f32.mrf.mxu0
  %v1864 = vpop.f32.mrf.mxu0
  %1865 = vdwg.mxu0
  %1866 = vmatprep.subr.bf16.mxu0 0
  %1867 = vmatpush1.bf16.msra.mxu0 %v1369
  %1868 = vmatprep.subr.bf16.mxu0 0
  %1869 = vmatpush1.bf16.msra.mxu0 %v1368
  %1870 = vmatprep.subr.bf16.mxu0 0
  %1871 = vmatpush1.bf16.msra.mxu0 %v1367
  %1872 = vmatprep.subr.bf16.mxu0 0
  %1873 = vmatpush1.bf16.msra.mxu0 %v1366
  %1874 = vmatprep.subr.bf16.mxu0 0
  %1875 = vmatpush1.bf16.msra.mxu0 %v1365
  %1876 = vmatprep.subr.bf16.mxu0 0
  %1877 = vmatpush1.bf16.msra.mxu0 %v1364
  %1878 = vmatprep.subr.bf16.mxu0 0
  %1879 = vmatpush1.bf16.msra.mxu0 %v1363
  %1880 = vmatprep.subr.bf16.mxu0 0
  %1881 = vmatpush1.bf16.msra.mxu0 %v1362
  %1882 = vmatprep.subr.bf16.mxu0 0
  %1883 = vmatpush2.bf16.msra.mxu0 %v1377
  %1884 = vmatprep.subr.bf16.mxu0 0
  %1885 = vmatpush2.bf16.msra.mxu0 %v1376
  %1886 = vmatprep.subr.bf16.mxu0 0
  %1887 = vmatpush2.bf16.msra.mxu0 %v1375
  %1888 = vmatprep.subr.bf16.mxu0 0
  %1889 = vmatpush2.bf16.msra.mxu0 %v1374
  %1890 = vmatprep.subr.bf16.mxu0 0
  %1891 = vmatpush2.bf16.msra.mxu0 %v1373
  %1892 = vmatprep.subr.bf16.mxu0 0
  %1893 = vmatpush2.bf16.msra.mxu0 %v1372
  %1894 = vmatprep.subr.bf16.mxu0 0
  %1895 = vmatpush2.bf16.msra.mxu0 %v1371
  %1896 = vmatprep.subr.bf16.mxu0 0
  %1897 = vmatpush2.bf16.msra.mxu0 %v1370
  %1898 = vmatprep.mubr.bf16.mxu0 %v477
  %1899 = vmatmul.mubr.bf16.gmra.mxu0 %v476
  %v1900 = vpop.f32.mrf.mxu0
  %v1901 = vadd.f32 %v1861, %v1900
  %v1902 = vpop.f32.mrf.mxu0
  %v1903 = vpop.f32.mrf.mxu0
  %v1904 = vpop.f32.mrf.mxu0
  %1905 = vdwg.mxu0
  %1906 = vmatprep.subr.bf16.mxu0 0
  %1907 = vmatpush1.bf16.msra.mxu0 %v1385
  %1908 = vmatprep.subr.bf16.mxu0 0
  %1909 = vmatpush1.bf16.msra.mxu0 %v1384
  %1910 = vmatprep.subr.bf16.mxu0 0
  %1911 = vmatpush1.bf16.msra.mxu0 %v1383
  %1912 = vmatprep.subr.bf16.mxu0 0
  %1913 = vmatpush1.bf16.msra.mxu0 %v1382
  %1914 = vmatprep.subr.bf16.mxu0 0
  %1915 = vmatpush1.bf16.msra.mxu0 %v1381
  %1916 = vmatprep.subr.bf16.mxu0 0
  %1917 = vmatpush1.bf16.msra.mxu0 %v1380
  %1918 = vmatprep.subr.bf16.mxu0 0
  %1919 = vmatpush1.bf16.msra.mxu0 %v1379
  %1920 = vmatprep.subr.bf16.mxu0 0
  %1921 = vmatpush1.bf16.msra.mxu0 %v1378
  %1922 = vmatprep.subr.bf16.mxu0 0
  %1923 = vmatpush2.bf16.msra.mxu0 %v1393
  %1924 = vmatprep.subr.bf16.mxu0 0
  %1925 = vmatpush2.bf16.msra.mxu0 %v1392
  %1926 = vmatprep.subr.bf16.mxu0 0
  %1927 = vmatpush2.bf16.msra.mxu0 %v1391
  %1928 = vmatprep.subr.bf16.mxu0 0
  %1929 = vmatpush2.bf16.msra.mxu0 %v1390
  %1930 = vmatprep.subr.bf16.mxu0 0
  %1931 = vmatpush2.bf16.msra.mxu0 %v1389
  %1932 = vmatprep.subr.bf16.mxu0 0
  %1933 = vmatpush2.bf16.msra.mxu0 %v1388
  %1934 = vmatprep.subr.bf16.mxu0 0
  %1935 = vmatpush2.bf16.msra.mxu0 %v1387
  %1936 = vmatprep.subr.bf16.mxu0 0
  %1937 = vmatpush2.bf16.msra.mxu0 %v1386
  %1938 = vmatprep.mubr.bf16.mxu0 %v479
  %1939 = vmatmul.mubr.bf16.gmra.mxu0 %v478
  %v1940 = vpop.f32.mrf.mxu0
  %v1941 = vadd.f32 %v1901, %v1940
  %v1942 = vpop.f32.mrf.mxu0
  %v1943 = vpop.f32.mrf.mxu0
  %v1944 = vpop.f32.mrf.mxu0
  %1945 = vdwg.mxu0
  %1946 = vmatprep.subr.bf16.mxu0 0
  %1947 = vmatpush1.bf16.msra.mxu0 %v1401
  %1948 = vmatprep.subr.bf16.mxu0 0
  %1949 = vmatpush1.bf16.msra.mxu0 %v1400
  %1950 = vmatprep.subr.bf16.mxu0 0
  %1951 = vmatpush1.bf16.msra.mxu0 %v1399
  %1952 = vmatprep.subr.bf16.mxu0 0
  %1953 = vmatpush1.bf16.msra.mxu0 %v1398
  %1954 = vmatprep.subr.bf16.mxu0 0
  %1955 = vmatpush1.bf16.msra.mxu0 %v1397
  %1956 = vmatprep.subr.bf16.mxu0 0
  %1957 = vmatpush1.bf16.msra.mxu0 %v1396
  %1958 = vmatprep.subr.bf16.mxu0 0
  %1959 = vmatpush1.bf16.msra.mxu0 %v1395
  %1960 = vmatprep.subr.bf16.mxu0 0
  %1961 = vmatpush1.bf16.msra.mxu0 %v1394
  %1962 = vmatprep.subr.bf16.mxu0 0
  %1963 = vmatpush2.bf16.msra.mxu0 %v1409
  %1964 = vmatprep.subr.bf16.mxu0 0
  %1965 = vmatpush2.bf16.msra.mxu0 %v1408
  %1966 = vmatprep.subr.bf16.mxu0 0
  %1967 = vmatpush2.bf16.msra.mxu0 %v1407
  %1968 = vmatprep.subr.bf16.mxu0 0
  %1969 = vmatpush2.bf16.msra.mxu0 %v1406
  %1970 = vmatprep.subr.bf16.mxu0 0
  %1971 = vmatpush2.bf16.msra.mxu0 %v1405
  %1972 = vmatprep.subr.bf16.mxu0 0
  %1973 = vmatpush2.bf16.msra.mxu0 %v1404
  %1974 = vmatprep.subr.bf16.mxu0 0
  %1975 = vmatpush2.bf16.msra.mxu0 %v1403
  %1976 = vmatprep.subr.bf16.mxu0 0
  %1977 = vmatpush2.bf16.msra.mxu0 %v1402
  %1978 = vmatprep.mubr.bf16.mxu0 %v481
  %1979 = vmatmul.mubr.bf16.gmra.mxu0 %v480
  %v1980 = vpop.f32.mrf.mxu0
  %v1981 = vadd.f32 %v1941, %v1980
  %v1982 = vpop.f32.mrf.mxu0
  %v1983 = vpop.f32.mrf.mxu0
  %v1984 = vpop.f32.mrf.mxu0
  %1985 = vdwg.mxu0
  %1986 = vmatprep.subr.bf16.mxu0 0
  %1987 = vmatpush1.bf16.msra.mxu0 %v1417
  %1988 = vmatprep.subr.bf16.mxu0 0
  %1989 = vmatpush1.bf16.msra.mxu0 %v1416
  %1990 = vmatprep.subr.bf16.mxu0 0
  %1991 = vmatpush1.bf16.msra.mxu0 %v1415
  %1992 = vmatprep.subr.bf16.mxu0 0
  %1993 = vmatpush1.bf16.msra.mxu0 %v1414
  %1994 = vmatprep.subr.bf16.mxu0 0
  %1995 = vmatpush1.bf16.msra.mxu0 %v1413
  %1996 = vmatprep.subr.bf16.mxu0 0
  %1997 = vmatpush1.bf16.msra.mxu0 %v1412
  %1998 = vmatprep.subr.bf16.mxu0 0
  %1999 = vmatpush1.bf16.msra.mxu0 %v1411
  %2000 = vmatprep.subr.bf16.mxu0 0
  %2001 = vmatpush1.bf16.msra.mxu0 %v1410
  %2002 = vmatprep.subr.bf16.mxu0 0
  %2003 = vmatpush2.bf16.msra.mxu0 %v1425
  %2004 = vmatprep.subr.bf16.mxu0 0
  %2005 = vmatpush2.bf16.msra.mxu0 %v1424
  %2006 = vmatprep.subr.bf16.mxu0 0
  %2007 = vmatpush2.bf16.msra.mxu0 %v1423
  %2008 = vmatprep.subr.bf16.mxu0 0
  %2009 = vmatpush2.bf16.msra.mxu0 %v1422
  %2010 = vmatprep.subr.bf16.mxu0 0
  %2011 = vmatpush2.bf16.msra.mxu0 %v1421
  %2012 = vmatprep.subr.bf16.mxu0 0
  %2013 = vmatpush2.bf16.msra.mxu0 %v1420
  %2014 = vmatprep.subr.bf16.mxu0 0
  %2015 = vmatpush2.bf16.msra.mxu0 %v1419
  %2016 = vmatprep.subr.bf16.mxu0 0
  %2017 = vmatpush2.bf16.msra.mxu0 %v1418
  %2018 = vmatprep.mubr.bf16.mxu0 %v483
  %2019 = vmatmul.mubr.bf16.gmra.mxu0 %v482
  %v2020 = vpop.f32.mrf.mxu0
  %v2021 = vadd.f32 %v1981, %v2020
  %v2022 = vpop.f32.mrf.mxu0
  %v2023 = vpop.f32.mrf.mxu0
  %v2024 = vpop.f32.mrf.mxu0
  %2025 = vdwg.mxu0
  %2026 = vmatprep.subr.bf16.mxu0 0
  %2027 = vmatpush1.bf16.msra.mxu0 %v1433
  %2028 = vmatprep.subr.bf16.mxu0 0
  %2029 = vmatpush1.bf16.msra.mxu0 %v1432
  %2030 = vmatprep.subr.bf16.mxu0 0
  %2031 = vmatpush1.bf16.msra.mxu0 %v1431
  %2032 = vmatprep.subr.bf16.mxu0 0
  %2033 = vmatpush1.bf16.msra.mxu0 %v1430
  %2034 = vmatprep.subr.bf16.mxu0 0
  %2035 = vmatpush1.bf16.msra.mxu0 %v1429
  %2036 = vmatprep.subr.bf16.mxu0 0
  %2037 = vmatpush1.bf16.msra.mxu0 %v1428
  %2038 = vmatprep.subr.bf16.mxu0 0
  %2039 = vmatpush1.bf16.msra.mxu0 %v1427
  %2040 = vmatprep.subr.bf16.mxu0 0
  %2041 = vmatpush1.bf16.msra.mxu0 %v1426
  %2042 = vmatprep.subr.bf16.mxu0 0
  %2043 = vmatpush2.bf16.msra.mxu0 %v1441
  %2044 = vmatprep.subr.bf16.mxu0 0
  %2045 = vmatpush2.bf16.msra.mxu0 %v1440
  %2046 = vmatprep.subr.bf16.mxu0 0
  %2047 = vmatpush2.bf16.msra.mxu0 %v1439
  %2048 = vmatprep.subr.bf16.mxu0 0
  %2049 = vmatpush2.bf16.msra.mxu0 %v1438
  %2050 = vmatprep.subr.bf16.mxu0 0
  %2051 = vmatpush2.bf16.msra.mxu0 %v1437
  %2052 = vmatprep.subr.bf16.mxu0 0
  %2053 = vmatpush2.bf16.msra.mxu0 %v1436
  %2054 = vmatprep.subr.bf16.mxu0 0
  %2055 = vmatpush2.bf16.msra.mxu0 %v1435
  %2056 = vmatprep.subr.bf16.mxu0 0
  %2057 = vmatpush2.bf16.msra.mxu0 %v1434
  %2058 = vmatprep.mubr.bf16.mxu0 %v485
  %2059 = vmatmul.mubr.bf16.gmra.mxu0 %v484
  %v2060 = vpop.f32.mrf.mxu0
  %v2061 = vadd.f32 %v2021, %v2060
  %v2062 = vpop.f32.mrf.mxu0
  %v2063 = vpop.f32.mrf.mxu0
  %v2064 = vpop.f32.mrf.mxu0
  %2065 = vdwg.mxu0
  %2066 = vmatprep.subr.bf16.mxu0 0
  %2067 = vmatpush1.bf16.msra.mxu0 %v1449
  %2068 = vmatprep.subr.bf16.mxu0 0
  %2069 = vmatpush1.bf16.msra.mxu0 %v1448
  %2070 = vmatprep.subr.bf16.mxu0 0
  %2071 = vmatpush1.bf16.msra.mxu0 %v1447
  %2072 = vmatprep.subr.bf16.mxu0 0
  %2073 = vmatpush1.bf16.msra.mxu0 %v1446
  %2074 = vmatprep.subr.bf16.mxu0 0
  %2075 = vmatpush1.bf16.msra.mxu0 %v1445
  %2076 = vmatprep.subr.bf16.mxu0 0
  %2077 = vmatpush1.bf16.msra.mxu0 %v1444
  %2078 = vmatprep.subr.bf16.mxu0 0
  %2079 = vmatpush1.bf16.msra.mxu0 %v1443
  %2080 = vmatprep.subr.bf16.mxu0 0
  %2081 = vmatpush1.bf16.msra.mxu0 %v1442
  %2082 = vmatprep.subr.bf16.mxu0 0
  %2083 = vmatpush2.bf16.msra.mxu0 %v1457
  %2084 = vmatprep.subr.bf16.mxu0 0
  %2085 = vmatpush2.bf16.msra.mxu0 %v1456
  %2086 = vmatprep.subr.bf16.mxu0 0
  %2087 = vmatpush2.bf16.msra.mxu0 %v1455
  %2088 = vmatprep.subr.bf16.mxu0 0
  %2089 = vmatpush2.bf16.msra.mxu0 %v1454
  %2090 = vmatprep.subr.bf16.mxu0 0
  %2091 = vmatpush2.bf16.msra.mxu0 %v1453
  %2092 = vmatprep.subr.bf16.mxu0 0
  %2093 = vmatpush2.bf16.msra.mxu0 %v1452
  %2094 = vmatprep.subr.bf16.mxu0 0
  %2095 = vmatpush2.bf16.msra.mxu0 %v1451
  %2096 = vmatprep.subr.bf16.mxu0 0
  %2097 = vmatpush2.bf16.msra.mxu0 %v1450
  %2098 = vmatprep.mubr.bf16.mxu0 %v487
  %2099 = vmatmul.mubr.bf16.gmra.mxu0 %v486
  %v2100 = vpop.f32.mrf.mxu0
  %v2101 = vadd.f32 %v2061, %v2100
  %v2102 = vpop.f32.mrf.mxu0
  %v2103 = vpop.f32.mrf.mxu0
  %v2104 = vpop.f32.mrf.mxu0
  %2105 = vdwg.mxu0
  %2106 = vmatprep.subr.bf16.mxu0 0
  %2107 = vmatpush1.bf16.msra.mxu0 %v1465
  %2108 = vmatprep.subr.bf16.mxu0 0
  %2109 = vmatpush1.bf16.msra.mxu0 %v1464
  %2110 = vmatprep.subr.bf16.mxu0 0
  %2111 = vmatpush1.bf16.msra.mxu0 %v1463
  %2112 = vmatprep.subr.bf16.mxu0 0
  %2113 = vmatpush1.bf16.msra.mxu0 %v1462
  %2114 = vmatprep.subr.bf16.mxu0 0
  %2115 = vmatpush1.bf16.msra.mxu0 %v1461
  %2116 = vmatprep.subr.bf16.mxu0 0
  %2117 = vmatpush1.bf16.msra.mxu0 %v1460
  %2118 = vmatprep.subr.bf16.mxu0 0
  %2119 = vmatpush1.bf16.msra.mxu0 %v1459
  %2120 = vmatprep.subr.bf16.mxu0 0
  %2121 = vmatpush1.bf16.msra.mxu0 %v1458
  %2122 = vmatprep.subr.bf16.mxu0 0
  %2123 = vmatpush2.bf16.msra.mxu0 %v1473
  %2124 = vmatprep.subr.bf16.mxu0 0
  %2125 = vmatpush2.bf16.msra.mxu0 %v1472
  %2126 = vmatprep.subr.bf16.mxu0 0
  %2127 = vmatpush2.bf16.msra.mxu0 %v1471
  %2128 = vmatprep.subr.bf16.mxu0 0
  %2129 = vmatpush2.bf16.msra.mxu0 %v1470
  %2130 = vmatprep.subr.bf16.mxu0 0
  %2131 = vmatpush2.bf16.msra.mxu0 %v1469
  %2132 = vmatprep.subr.bf16.mxu0 0
  %2133 = vmatpush2.bf16.msra.mxu0 %v1468
  %2134 = vmatprep.subr.bf16.mxu0 0
  %2135 = vmatpush2.bf16.msra.mxu0 %v1467
  %2136 = vmatprep.subr.bf16.mxu0 0
  %2137 = vmatpush2.bf16.msra.mxu0 %v1466
  %2138 = vmatprep.mubr.bf16.mxu0 %v489
  %2139 = vmatmul.mubr.bf16.gmra.mxu0 %v488
  %v2140 = vpop.f32.mrf.mxu0
  %v2141 = vadd.f32 %v2101, %v2140
  %v2142 = vpop.f32.mrf.mxu0
  %v2143 = vpop.f32.mrf.mxu0
  %v2144 = vpop.f32.mrf.mxu0
  %2145 = vdwg.mxu0
  %v2146 = vld [vmem:[%s3] sm:$0xf]
  %v2147 = vld [vmem:[%s5] sm:$0xf]
  %v2148 = vld [vmem:[%s5 + $0x4] sm:$0xf]
  %v2149 = vld [vmem:[%s5 + $0x8] sm:$0xf]
  %v2150 = vld [vmem:[%s5 + $0xc] sm:$0xf]
  %v2151 = vld [vmem:[%s6] sm:$0x1]
  %v2152 = vld [vmem:[%s4] sm:$0xf]
  %v2153 = vadd.f32 %v2141, %v2152
  %v2154 = vpack.c.bf16 %v2153, %v2153
  %vm2155 = vcmask 261120
  %v2157 = vsel %vm2155, %v2146, 0
  %v2160 = vsel %vm2155, %v2154, 0
  %2162 = vmatprep.subr.bf16.mxu0 0
  %2163 = vmatpush1.bf16.xpose.msra.mxu0 0
  %2164 = vmatprep.subr.bf16.mxu0 0
  %2165 = vmatpush1.bf16.xpose.msra.mxu0 0
  %2166 = vmatprep.subr.bf16.mxu0 0
  %2167 = vmatpush1.bf16.xpose.msra.mxu0 0
  %2168 = vmatprep.subr.bf16.mxu0 0
  %2169 = vmatpush1.bf16.xpose.msra.mxu0 0
  %2170 = vmatprep.subr.bf16.mxu0 0
  %2171 = vmatpush1.bf16.xpose.msra.mxu0 0
  %2172 = vmatprep.subr.bf16.mxu0 0
  %2173 = vmatpush1.bf16.xpose.msra.mxu0 0
  %2174 = vmatprep.subr.bf16.mxu0 0
  %2175 = vmatpush1.bf16.xpose.msra.mxu0 0
  %2176 = vmatprep.subr.bf16.mxu0 0
  %2177 = vmatpush1.bf16.xpose.msra.mxu0 %v2160
  %2178 = vmatprep.subr.bf16.mxu0 0
  %2179 = vmatpush2.bf16.xpose.msra.mxu0 0
  %2180 = vmatprep.subr.bf16.mxu0 0
  %2181 = vmatpush2.bf16.xpose.msra.mxu0 0
  %2182 = vmatprep.subr.bf16.mxu0 0
  %2183 = vmatpush2.bf16.xpose.msra.mxu0 0
  %2184 = vmatprep.subr.bf16.mxu0 0
  %2185 = vmatpush2.bf16.xpose.msra.mxu0 0
  %2186 = vmatprep.subr.bf16.mxu0 0
  %2187 = vmatpush2.bf16.xpose.msra.mxu0 0
  %2188 = vmatprep.subr.bf16.mxu0 0
  %2189 = vmatpush2.bf16.xpose.msra.mxu0 0
  %2190 = vmatprep.subr.bf16.mxu0 0
  %2191 = vmatpush2.bf16.xpose.msra.mxu0 0
  %2192 = vmatprep.subr.bf16.mxu0 0
  %2193 = vmatpush2.bf16.xpose.msra.mxu0 0
  %2194 = vmatprep.mubr.bf16.mxu0 0
  %2195 = vmatmul.mubr.bf16.gmra.mxu0 %v2157
  %v2196 = vpop.f32.mrf.mxu0
  %v2197 = vadd.f32 0.0, %v2196
  %v2198 = vpop.f32.mrf.mxu0
  %v2199 = vpop.f32.mrf.mxu0
  %v2200 = vpop.f32.mrf.mxu0
  %2201 = vdwg.mxu0
  %v2202 = vmul.f32 %v2197, 0.17677669
  %vm2203 = vcmask 31744
  %v2204 = vsel %vm2203, %v2202, -inf
  %2205 = vmax.xlane.f32.xlu0 %v2204
  %v2206 = vpop.xlane.xlu0 %2205
  %v2207 = vsub.f32 %v2202, %v2206
  %v2208 = vmul.f32 %v2207, 1.442695
  %v2209 = vpow.pop %v2208
  %v2210 = vsel %vm2203, %v2209, 0.0
  %2211 = vadd.xlane.f32.xlu0 %v2210
  %v2212 = vpop.xlane.xlu0 %2211
  %v2213 = vrcp.pop %v2212
  %v2214 = vmul.f32 %v2209, %v2213
  %v2215 = vpack.c.bf16 %v2214, %v2214
  %v2216 = vpack.c.bf16 %v2141, %v2141
  %v2218 = vsel %vm2203, %v2215, 0
  %vm2220 = vcmask 1041408
  %v2222 = vsel %vm2220, %v2216, 0
  %2224 = vmatprep.subr.bf16.mxu0 0
  %2225 = vmatpush1.bf16.msra.mxu0 0
  %2226 = vmatprep.subr.bf16.mxu0 0
  %2227 = vmatpush1.bf16.msra.mxu0 0
  %2228 = vmatprep.subr.bf16.mxu0 0
  %2229 = vmatpush1.bf16.msra.mxu0 0
  %2230 = vmatprep.subr.bf16.mxu0 0
  %2231 = vmatpush1.bf16.msra.mxu0 0
  %2232 = vmatprep.subr.bf16.mxu0 0
  %2233 = vmatpush1.bf16.msra.mxu0 0
  %2234 = vmatprep.subr.bf16.mxu0 0
  %2235 = vmatpush1.bf16.msra.mxu0 0
  %2236 = vmatprep.subr.bf16.mxu0 0
  %2237 = vmatpush1.bf16.msra.mxu0 0
  %2238 = vmatprep.subr.bf16.mxu0 0
  %2239 = vmatpush1.bf16.msra.mxu0 %v2222
  %2240 = vmatprep.subr.bf16.mxu0 0
  %2241 = vmatpush2.bf16.msra.mxu0 0
  %2242 = vmatprep.subr.bf16.mxu0 0
  %2243 = vmatpush2.bf16.msra.mxu0 0
  %2244 = vmatprep.subr.bf16.mxu0 0
  %2245 = vmatpush2.bf16.msra.mxu0 0
  %2246 = vmatprep.subr.bf16.mxu0 0
  %2247 = vmatpush2.bf16.msra.mxu0 0
  %2248 = vmatprep.subr.bf16.mxu0 0
  %2249 = vmatpush2.bf16.msra.mxu0 0
  %2250 = vmatprep.subr.bf16.mxu0 0
  %2251 = vmatpush2.bf16.msra.mxu0 0
  %2252 = vmatprep.subr.bf16.mxu0 0
  %2253 = vmatpush2.bf16.msra.mxu0 0
  %2254 = vmatprep.subr.bf16.mxu0 0
  %2255 = vmatpush2.bf16.msra.mxu0 0
  %2256 = vmatprep.mubr.bf16.mxu0 0
  %2257 = vmatmul.mubr.bf16.gmra.mxu0 %v2218
  %v2258 = vpop.f32.mrf.mxu0
  %v2259 = vadd.f32 0.0, %v2258
  %v2260 = vpop.f32.mrf.mxu0
  %v2261 = vpop.f32.mrf.mxu0
  %v2262 = vpop.f32.mrf.mxu0
  %2263 = vdwg.mxu0
  %v2264 = vpack.c.bf16 %v2259, %v2259
  %v2266 = vlaneseq
  %v2267 = vshrl.u32 %v2266, 7
  %v2268 = vsub.s32 0, %v2267
  %v2269 = vrot.slane %v2151, %v2268
  %v2275 = vunpack.c.l.b16 %v2147
  %v2276 = vunpack.c.l.b16 %v2148
  %v2277 = vunpack.c.l.b16 %v2149
  %v2278 = vunpack.c.l.b16 %v2150
  %v2279 = vpack.c.b16 %v2276, %v2275
  %v2280 = vpack.c.b16 %v2278, %v2277
  %v2284 = vsel %vm2155, %v2264, 0
  %2286 = vmatprep.subr.bf16.mxu0 0
  %2287 = vmatpush1.bf16.msra.mxu0 0
  %2288 = vmatprep.subr.bf16.mxu0 0
  %2289 = vmatpush1.bf16.msra.mxu0 0
  %2290 = vmatprep.subr.bf16.mxu0 0
  %2291 = vmatpush1.bf16.msra.mxu0 0
  %2292 = vmatprep.subr.bf16.mxu0 0
  %2293 = vmatpush1.bf16.msra.mxu0 0
  %2294 = vmatprep.subr.bf16.mxu0 0
  %2295 = vmatpush1.bf16.msra.mxu0 0
  %2296 = vmatprep.subr.bf16.mxu0 0
  %2297 = vmatpush1.bf16.msra.mxu0 0
  %2298 = vmatprep.subr.bf16.mxu0 0
  %2299 = vmatpush1.bf16.msra.mxu0 %v2280
  %2300 = vmatprep.subr.bf16.mxu0 0
  %2301 = vmatpush1.bf16.msra.mxu0 %v2279
  %2302 = vmatprep.subr.bf16.mxu0 0
  %2303 = vmatpush2.bf16.msra.mxu0 0
  %2304 = vmatprep.subr.bf16.mxu0 0
  %2305 = vmatpush2.bf16.msra.mxu0 0
  %2306 = vmatprep.subr.bf16.mxu0 0
  %2307 = vmatpush2.bf16.msra.mxu0 0
  %2308 = vmatprep.subr.bf16.mxu0 0
  %2309 = vmatpush2.bf16.msra.mxu0 0
  %2310 = vmatprep.subr.bf16.mxu0 0
  %2311 = vmatpush2.bf16.msra.mxu0 0
  %2312 = vmatprep.subr.bf16.mxu0 0
  %2313 = vmatpush2.bf16.msra.mxu0 0
  %2314 = vmatprep.subr.bf16.mxu0 0
  %2315 = vmatpush2.bf16.msra.mxu0 0
  %2316 = vmatprep.subr.bf16.mxu0 0
  %2317 = vmatpush2.bf16.msra.mxu0 0
  %2318 = vmatprep.mubr.bf16.mxu0 0
  %2319 = vmatmul.mubr.bf16.gmra.mxu0 %v2284
  %v2320 = vpop.f32.mrf.mxu0
  %v2321 = vadd.f32 %v2269, %v2320
  %v2322 = vpop.f32.mrf.mxu0
  %v2323 = vpop.f32.mrf.mxu0
  %v2324 = vpop.f32.mrf.mxu0
  %2325 = vdwg.mxu0
  %v2326 = vmax.f32 %v2321, 0.0
  %v2327 = vpack.c.bf16 %v2326, %v2326
  %2329 = vrot.lane.b32.xlu0 %v2327, 112
  %v2330 = vpop.permute.xlu0 %2329
  %2331 = vrot.lane.b32.xlu0 %v2279, 80
  %v2332 = vpop.permute.xlu0 %2331
  %2333 = vrot.lane.b32.xlu0 %v2280, 80
  %v2334 = vpop.permute.xlu0 %2333
  %2337 = vrot.lane.b32.xlu0 %v2269, 80
  %v2338 = vpop.permute.xlu0 %2337
  %v2341 = vsel %vm2155, %v2330, 0
  %2343 = vmatprep.subr.bf16.mxu0 0
  %2344 = vmatpush1.bf16.msra.mxu0 0
  %2345 = vmatprep.subr.bf16.mxu0 0
  %2346 = vmatpush1.bf16.msra.mxu0 0
  %2347 = vmatprep.subr.bf16.mxu0 0
  %2348 = vmatpush1.bf16.msra.mxu0 0
  %2349 = vmatprep.subr.bf16.mxu0 0
  %2350 = vmatpush1.bf16.msra.mxu0 0
  %2351 = vmatprep.subr.bf16.mxu0 0
  %2352 = vmatpush1.bf16.msra.mxu0 0
  %2353 = vmatprep.subr.bf16.mxu0 0
  %2354 = vmatpush1.bf16.msra.mxu0 0
  %2355 = vmatprep.subr.bf16.mxu0 0
  %2356 = vmatpush1.bf16.msra.mxu0 %v2334
  %2357 = vmatprep.subr.bf16.mxu0 0
  %2358 = vmatpush1.bf16.msra.mxu0 %v2332
  %2359 = vmatprep.subr.bf16.mxu0 0
  %2360 = vmatpush2.bf16.msra.mxu0 0
  %2361 = vmatprep.subr.bf16.mxu0 0
  %2362 = vmatpush2.bf16.msra.mxu0 0
  %2363 = vmatprep.subr.bf16.mxu0 0
  %2364 = vmatpush2.bf16.msra.mxu0 0
  %2365 = vmatprep.subr.bf16.mxu0 0
  %2366 = vmatpush2.bf16.msra.mxu0 0
  %2367 = vmatprep.subr.bf16.mxu0 0
  %2368 = vmatpush2.bf16.msra.mxu0 0
  %2369 = vmatprep.subr.bf16.mxu0 0
  %2370 = vmatpush2.bf16.msra.mxu0 0
  %2371 = vmatprep.subr.bf16.mxu0 0
  %2372 = vmatpush2.bf16.msra.mxu0 0
  %2373 = vmatprep.subr.bf16.mxu0 0
  %2374 = vmatpush2.bf16.msra.mxu0 0
  %2375 = vmatprep.mubr.bf16.mxu0 0
  %2376 = vmatmul.mubr.bf16.gmra.mxu0 %v2341
  %v2377 = vpop.f32.mrf.mxu0
  %v2378 = vadd.f32 %v2338, %v2377
  %v2379 = vpop.f32.mrf.mxu0
  %v2380 = vpop.f32.mrf.mxu0
  %v2381 = vpop.f32.mrf.mxu0
  %2382 = vdwg.mxu0
  %v2383 = vmax.f32 %v2378, 0.0
  %v2384 = vpack.c.bf16 %v2383, %v2383
  %2385 = vrot.lane.b32.xlu0 %v2279, 48
  %v2386 = vpop.permute.xlu0 %2385
  %2387 = vrot.lane.b32.xlu0 %v2280, 48
  %v2388 = vpop.permute.xlu0 %2387
  %2391 = vrot.lane.b32.xlu0 %v2269, 48
  %v2392 = vpop.permute.xlu0 %2391
  %v2395 = vsel %vm2155, %v2384, 0
  %2397 = vmatprep.subr.bf16.mxu0 0
  %2398 = vmatpush1.bf16.msra.mxu0 0
  %2399 = vmatprep.subr.bf16.mxu0 0
  %2400 = vmatpush1.bf16.msra.mxu0 0
  %2401 = vmatprep.subr.bf16.mxu0 0
  %2402 = vmatpush1.bf16.msra.mxu0 0
  %2403 = vmatprep.subr.bf16.mxu0 0
  %2404 = vmatpush1.bf16.msra.mxu0 0
  %2405 = vmatprep.subr.bf16.mxu0 0
  %2406 = vmatpush1.bf16.msra.mxu0 0
  %2407 = vmatprep.subr.bf16.mxu0 0
  %2408 = vmatpush1.bf16.msra.mxu0 0
  %2409 = vmatprep.subr.bf16.mxu0 0
  %2410 = vmatpush1.bf16.msra.mxu0 %v2388
  %2411 = vmatprep.subr.bf16.mxu0 0
  %2412 = vmatpush1.bf16.msra.mxu0 %v2386
  %2413 = vmatprep.subr.bf16.mxu0 0
  %2414 = vmatpush2.bf16.msra.mxu0 0
  %2415 = vmatprep.subr.bf16.mxu0 0
  %2416 = vmatpush2.bf16.msra.mxu0 0
  %2417 = vmatprep.subr.bf16.mxu0 0
  %2418 = vmatpush2.bf16.msra.mxu0 0
  %2419 = vmatprep.subr.bf16.mxu0 0
  %2420 = vmatpush2.bf16.msra.mxu0 0
  %2421 = vmatprep.subr.bf16.mxu0 0
  %2422 = vmatpush2.bf16.msra.mxu0 0
  %2423 = vmatprep.subr.bf16.mxu0 0
  %2424 = vmatpush2.bf16.msra.mxu0 0
  %2425 = vmatprep.subr.bf16.mxu0 0
  %2426 = vmatpush2.bf16.msra.mxu0 0
  %2427 = vmatprep.subr.bf16.mxu0 0
  %2428 = vmatpush2.bf16.msra.mxu0 0
  %2429 = vmatprep.mubr.bf16.mxu0 0
  %2430 = vmatmul.mubr.bf16.gmra.mxu0 %v2395
  %v2431 = vpop.f32.mrf.mxu0
  %v2432 = vadd.f32 %v2392, %v2431
  %v2433 = vpop.f32.mrf.mxu0
  %v2434 = vpop.f32.mrf.mxu0
  %v2435 = vpop.f32.mrf.mxu0
  %2436 = vdwg.mxu0
  %v2437 = vxor.u32 %v2432, 2147483648
  %v2438 = vmul.f32 %v2437, 1.442695
  %v2439 = vpow.pop %v2438
  %v2440 = vadd.f32 %v2439, 1.0
  %v2441 = vrcp.pop %v2440
  %v2442 = vmul.f32 1.0, %v2441
  %vm2443 = vcmask 89088
  %v2444 = vsel %vm2443, %v2321, -inf
  %2445 = vmax.xlane.f32.xlu0 %v2444
  %v2446 = vpop.xlane.xlu0 %2445
  %v2447 = vsub.f32 %v2321, %v2446
  %v2448 = vmul.f32 %v2447, 1.442695
  %v2449 = vpow.pop %v2448
  %v2450 = vsel %vm2443, %v2449, 0.0
  %2451 = vadd.xlane.f32.xlu0 %v2450
  %v2452 = vpop.xlane.xlu0 %2451
  %v2453 = vrcp.pop %v2452
  %v2454 = vmul.f32 %v2449, %v2453
  %v2455 = vsel %vm2443, %v2454, 0.0
  %vm2456 = vcmask 1043456
  %v2457 = vsel %vm2456, %v2141, 0.0
  %2459 = vrot.lane.b32.xlu0 %v2321, 32
  %v2460 = vpop.permute.xlu0 %2459
  %2463 = vrot.lane.b32.xlu0 %v2455, 48
  %v2464 = vpop.permute.xlu0 %2463
  %2467 = vrot.lane.b32.xlu0 %v2442, 64
  %v2468 = vpop.permute.xlu0 %2467
  %2471 = vrot.lane.b32.xlu0 %v2457, 48
  %v2472 = vpop.permute.xlu0 %2471
  %v2474 = vsel %vm2155, %v2259, %v2460
  %vm2475 = vcmask 392192
  %v2476 = vsel %vm2475, %v2474, %v2464
  %vm2477 = vcmask 523264
  %v2478 = vsel %vm2477, %v2476, %v2468
  %vm2479 = vcmask 654336
  %v2480 = vsel %vm2479, %v2478, %v2472
  %vm2481 = vcmask 785408
  %v2482 = vsel %vm2481, %v2480, 0.0
  %2483 = vst [vmem:[%s7] sm:$0xff] %v2482
  %s2484 = scalar_lea.vmem %s4, 4
  %v2485 = vld [vmem:[%s2484] sm:$0xf]
  %v2487 = vrot.slane %v2485, 4
  %v2489 = vadd.f32 %v2141, %v2487
  %v2490 = vpack.c.bf16 %v2489, %v2489
  %v2492 = vrot.slane %v2490, 2
  %v2494 = vsel %vm2155, %v2492, 0
  %2496 = vmatprep.subr.bf16.mxu0 0
  %2497 = vmatpush1.bf16.xpose.msra.mxu0 0
  %2498 = vmatprep.subr.bf16.mxu0 0
  %2499 = vmatpush1.bf16.xpose.msra.mxu0 0
  %2500 = vmatprep.subr.bf16.mxu0 0
  %2501 = vmatpush1.bf16.xpose.msra.mxu0 0
  %2502 = vmatprep.subr.bf16.mxu0 0
  %2503 = vmatpush1.bf16.xpose.msra.mxu0 0
  %2504 = vmatprep.subr.bf16.mxu0 0
  %2505 = vmatpush1.bf16.xpose.msra.mxu0 0
  %2506 = vmatprep.subr.bf16.mxu0 0
  %2507 = vmatpush1.bf16.xpose.msra.mxu0 0
  %2508 = vmatprep.subr.bf16.mxu0 0
  %2509 = vmatpush1.bf16.xpose.msra.mxu0 0
  %2510 = vmatprep.subr.bf16.mxu0 0
  %2511 = vmatpush1.bf16.xpose.msra.mxu0 %v2494
  %2512 = vmatprep.subr.bf16.mxu0 0
  %2513 = vmatpush2.bf16.xpose.msra.mxu0 0
  %2514 = vmatprep.subr.bf16.mxu0 0
  %2515 = vmatpush2.bf16.xpose.msra.mxu0 0
  %2516 = vmatprep.subr.bf16.mxu0 0
  %2517 = vmatpush2.bf16.xpose.msra.mxu0 0
  %2518 = vmatprep.subr.bf16.mxu0 0
  %2519 = vmatpush2.bf16.xpose.msra.mxu0 0
  %2520 = vmatprep.subr.bf16.mxu0 0
  %2521 = vmatpush2.bf16.xpose.msra.mxu0 0
  %2522 = vmatprep.subr.bf16.mxu0 0
  %2523 = vmatpush2.bf16.xpose.msra.mxu0 0
  %2524 = vmatprep.subr.bf16.mxu0 0
  %2525 = vmatpush2.bf16.xpose.msra.mxu0 0
  %2526 = vmatprep.subr.bf16.mxu0 0
  %2527 = vmatpush2.bf16.xpose.msra.mxu0 0
  %2528 = vmatprep.mubr.bf16.mxu0 0
  %2529 = vmatmul.mubr.bf16.gmra.mxu0 %v2157
  %v2530 = vpop.f32.mrf.mxu0
  %v2531 = vadd.f32 0.0, %v2530
  %v2532 = vpop.f32.mrf.mxu0
  %v2533 = vpop.f32.mrf.mxu0
  %v2534 = vpop.f32.mrf.mxu0
  %2535 = vdwg.mxu0
  %v2536 = vmul.f32 %v2531, 0.17677669
  %v2537 = vsel %vm2203, %v2536, -inf
  %2538 = vmax.xlane.f32.xlu0 %v2537
  %v2539 = vpop.xlane.xlu0 %2538
  %v2540 = vsub.f32 %v2536, %v2539
  %v2541 = vmul.f32 %v2540, 1.442695
  %v2542 = vpow.pop %v2541
  %v2543 = vsel %vm2203, %v2542, 0.0
  %2544 = vadd.xlane.f32.xlu0 %v2543
  %v2545 = vpop.xlane.xlu0 %2544
  %v2546 = vrcp.pop %v2545
  %v2547 = vmul.f32 %v2542, %v2546
  %v2548 = vpack.c.bf16 %v2547, %v2547
  %v2550 = vrot.slane %v2216, 2
  %v2552 = vsel %vm2203, %v2548, 0
  %v2555 = vsel %vm2220, %v2550, 0
  %2557 = vmatprep.subr.bf16.mxu0 0
  %2558 = vmatpush1.bf16.msra.mxu0 0
  %2559 = vmatprep.subr.bf16.mxu0 0
  %2560 = vmatpush1.bf16.msra.mxu0 0
  %2561 = vmatprep.subr.bf16.mxu0 0
  %2562 = vmatpush1.bf16.msra.mxu0 0
  %2563 = vmatprep.subr.bf16.mxu0 0
  %2564 = vmatpush1.bf16.msra.mxu0 0
  %2565 = vmatprep.subr.bf16.mxu0 0
  %2566 = vmatpush1.bf16.msra.mxu0 0
  %2567 = vmatprep.subr.bf16.mxu0 0
  %2568 = vmatpush1.bf16.msra.mxu0 0
  %2569 = vmatprep.subr.bf16.mxu0 0
  %2570 = vmatpush1.bf16.msra.mxu0 0
  %2571 = vmatprep.subr.bf16.mxu0 0
  %2572 = vmatpush1.bf16.msra.mxu0 %v2555
  %2573 = vmatprep.subr.bf16.mxu0 0
  %2574 = vmatpush2.bf16.msra.mxu0 0
  %2575 = vmatprep.subr.bf16.mxu0 0
  %2576 = vmatpush2.bf16.msra.mxu0 0
  %2577 = vmatprep.subr.bf16.mxu0 0
  %2578 = vmatpush2.bf16.msra.mxu0 0
  %2579 = vmatprep.subr.bf16.mxu0 0
  %2580 = vmatpush2.bf16.msra.mxu0 0
  %2581 = vmatprep.subr.bf16.mxu0 0
  %2582 = vmatpush2.bf16.msra.mxu0 0
  %2583 = vmatprep.subr.bf16.mxu0 0
  %2584 = vmatpush2.bf16.msra.mxu0 0
  %2585 = vmatprep.subr.bf16.mxu0 0
  %2586 = vmatpush2.bf16.msra.mxu0 0
  %2587 = vmatprep.subr.bf16.mxu0 0
  %2588 = vmatpush2.bf16.msra.mxu0 0
  %2589 = vmatprep.mubr.bf16.mxu0 0
  %2590 = vmatmul.mubr.bf16.gmra.mxu0 %v2552
  %v2591 = vpop.f32.mrf.mxu0
  %v2592 = vadd.f32 0.0, %v2591
  %v2593 = vpop.f32.mrf.mxu0
  %v2594 = vpop.f32.mrf.mxu0
  %v2595 = vpop.f32.mrf.mxu0
  %2596 = vdwg.mxu0
  %v2597 = vpack.c.bf16 %v2592, %v2592
  %v2599 = vsel %vm2155, %v2597, 0
  %2601 = vmatprep.subr.bf16.mxu0 0
  %2602 = vmatpush1.bf16.msra.mxu0 0
  %2603 = vmatprep.subr.bf16.mxu0 0
  %2604 = vmatpush1.bf16.msra.mxu0 0
  %2605 = vmatprep.subr.bf16.mxu0 0
  %2606 = vmatpush1.bf16.msra.mxu0 0
  %2607 = vmatprep.subr.bf16.mxu0 0
  %2608 = vmatpush1.bf16.msra.mxu0 0
  %2609 = vmatprep.subr.bf16.mxu0 0
  %2610 = vmatpush1.bf16.msra.mxu0 0
  %2611 = vmatprep.subr.bf16.mxu0 0
  %2612 = vmatpush1.bf16.msra.mxu0 0
  %2613 = vmatprep.subr.bf16.mxu0 0
  %2614 = vmatpush1.bf16.msra.mxu0 %v2280
  %2615 = vmatprep.subr.bf16.mxu0 0
  %2616 = vmatpush1.bf16.msra.mxu0 %v2279
  %2617 = vmatprep.subr.bf16.mxu0 0
  %2618 = vmatpush2.bf16.msra.mxu0 0
  %2619 = vmatprep.subr.bf16.mxu0 0
  %2620 = vmatpush2.bf16.msra.mxu0 0
  %2621 = vmatprep.subr.bf16.mxu0 0
  %2622 = vmatpush2.bf16.msra.mxu0 0
  %2623 = vmatprep.subr.bf16.mxu0 0
  %2624 = vmatpush2.bf16.msra.mxu0 0
  %2625 = vmatprep.subr.bf16.mxu0 0
  %2626 = vmatpush2.bf16.msra.mxu0 0
  %2627 = vmatprep.subr.bf16.mxu0 0
  %2628 = vmatpush2.bf16.msra.mxu0 0
  %2629 = vmatprep.subr.bf16.mxu0 0
  %2630 = vmatpush2.bf16.msra.mxu0 0
  %2631 = vmatprep.subr.bf16.mxu0 0
  %2632 = vmatpush2.bf16.msra.mxu0 0
  %2633 = vmatprep.mubr.bf16.mxu0 0
  %2634 = vmatmul.mubr.bf16.gmra.mxu0 %v2599
  %v2635 = vpop.f32.mrf.mxu0
  %v2636 = vadd.f32 %v2269, %v2635
  %v2637 = vpop.f32.mrf.mxu0
  %v2638 = vpop.f32.mrf.mxu0
  %v2639 = vpop.f32.mrf.mxu0
  %2640 = vdwg.mxu0
  %v2641 = vmax.f32 %v2636, 0.0
  %v2642 = vpack.c.bf16 %v2641, %v2641
  %2644 = vrot.lane.b32.xlu0 %v2642, 112
  %v2645 = vpop.permute.xlu0 %2644
  %v2647 = vsel %vm2155, %v2645, 0
  %2649 = vmatprep.subr.bf16.mxu0 0
  %2650 = vmatpush1.bf16.msra.mxu0 0
  %2651 = vmatprep.subr.bf16.mxu0 0
  %2652 = vmatpush1.bf16.msra.mxu0 0
  %2653 = vmatprep.subr.bf16.mxu0 0
  %2654 = vmatpush1.bf16.msra.mxu0 0
  %2655 = vmatprep.subr.bf16.mxu0 0
  %2656 = vmatpush1.bf16.msra.mxu0 0
  %2657 = vmatprep.subr.bf16.mxu0 0
  %2658 = vmatpush1.bf16.msra.mxu0 0
  %2659 = vmatprep.subr.bf16.mxu0 0
  %2660 = vmatpush1.bf16.msra.mxu0 0
  %2661 = vmatprep.subr.bf16.mxu0 0
  %2662 = vmatpush1.bf16.msra.mxu0 %v2334
  %2663 = vmatprep.subr.bf16.mxu0 0
  %2664 = vmatpush1.bf16.msra.mxu0 %v2332
  %2665 = vmatprep.subr.bf16.mxu0 0
  %2666 = vmatpush2.bf16.msra.mxu0 0
  %2667 = vmatprep.subr.bf16.mxu0 0
  %2668 = vmatpush2.bf16.msra.mxu0 0
  %2669 = vmatprep.subr.bf16.mxu0 0
  %2670 = vmatpush2.bf16.msra.mxu0 0
  %2671 = vmatprep.subr.bf16.mxu0 0
  %2672 = vmatpush2.bf16.msra.mxu0 0
  %2673 = vmatprep.subr.bf16.mxu0 0
  %2674 = vmatpush2.bf16.msra.mxu0 0
  %2675 = vmatprep.subr.bf16.mxu0 0
  %2676 = vmatpush2.bf16.msra.mxu0 0
  %2677 = vmatprep.subr.bf16.mxu0 0
  %2678 = vmatpush2.bf16.msra.mxu0 0
  %2679 = vmatprep.subr.bf16.mxu0 0
  %2680 = vmatpush2.bf16.msra.mxu0 0
  %2681 = vmatprep.mubr.bf16.mxu0 0
  %2682 = vmatmul.mubr.bf16.gmra.mxu0 %v2647
  %v2683 = vpop.f32.mrf.mxu0
  %v2684 = vadd.f32 %v2338, %v2683
  %v2685 = vpop.f32.mrf.mxu0
  %v2686 = vpop.f32.mrf.mxu0
  %v2687 = vpop.f32.mrf.mxu0
  %2688 = vdwg.mxu0
  %v2689 = vmax.f32 %v2684, 0.0
  %v2690 = vpack.c.bf16 %v2689, %v2689
  %v2692 = vsel %vm2155, %v2690, 0
  %2694 = vmatprep.subr.bf16.mxu0 0
  %2695 = vmatpush1.bf16.msra.mxu0 0
  %2696 = vmatprep.subr.bf16.mxu0 0
  %2697 = vmatpush1.bf16.msra.mxu0 0
  %2698 = vmatprep.subr.bf16.mxu0 0
  %2699 = vmatpush1.bf16.msra.mxu0 0
  %2700 = vmatprep.subr.bf16.mxu0 0
  %2701 = vmatpush1.bf16.msra.mxu0 0
  %2702 = vmatprep.subr.bf16.mxu0 0
  %2703 = vmatpush1.bf16.msra.mxu0 0
  %2704 = vmatprep.subr.bf16.mxu0 0
  %2705 = vmatpush1.bf16.msra.mxu0 0
  %2706 = vmatprep.subr.bf16.mxu0 0
  %2707 = vmatpush1.bf16.msra.mxu0 %v2388
  %2708 = vmatprep.subr.bf16.mxu0 0
  %2709 = vmatpush1.bf16.msra.mxu0 %v2386
  %2710 = vmatprep.subr.bf16.mxu0 0
  %2711 = vmatpush2.bf16.msra.mxu0 0
  %2712 = vmatprep.subr.bf16.mxu0 0
  %2713 = vmatpush2.bf16.msra.mxu0 0
  %2714 = vmatprep.subr.bf16.mxu0 0
  %2715 = vmatpush2.bf16.msra.mxu0 0
  %2716 = vmatprep.subr.bf16.mxu0 0
  %2717 = vmatpush2.bf16.msra.mxu0 0
  %2718 = vmatprep.subr.bf16.mxu0 0
  %2719 = vmatpush2.bf16.msra.mxu0 0
  %2720 = vmatprep.subr.bf16.mxu0 0
  %2721 = vmatpush2.bf16.msra.mxu0 0
  %2722 = vmatprep.subr.bf16.mxu0 0
  %2723 = vmatpush2.bf16.msra.mxu0 0
  %2724 = vmatprep.subr.bf16.mxu0 0
  %2725 = vmatpush2.bf16.msra.mxu0 0
  %2726 = vmatprep.mubr.bf16.mxu0 0
  %2727 = vmatmul.mubr.bf16.gmra.mxu0 %v2692
  %v2728 = vpop.f32.mrf.mxu0
  %v2729 = vadd.f32 %v2392, %v2728
  %v2730 = vpop.f32.mrf.mxu0
  %v2731 = vpop.f32.mrf.mxu0
  %v2732 = vpop.f32.mrf.mxu0
  %2733 = vdwg.mxu0
  %v2734 = vxor.u32 %v2729, 2147483648
  %v2735 = vmul.f32 %v2734, 1.442695
  %v2736 = vpow.pop %v2735
  %v2737 = vadd.f32 %v2736, 1.0
  %v2738 = vrcp.pop %v2737
  %v2739 = vmul.f32 1.0, %v2738
  %v2740 = vsel %vm2443, %v2636, -inf
  %2741 = vmax.xlane.f32.xlu0 %v2740
  %v2742 = vpop.xlane.xlu0 %2741
  %v2743 = vsub.f32 %v2636, %v2742
  %v2744 = vmul.f32 %v2743, 1.442695
  %v2745 = vpow.pop %v2744
  %v2746 = vsel %vm2443, %v2745, 0.0
  %2747 = vadd.xlane.f32.xlu0 %v2746
  %v2748 = vpop.xlane.xlu0 %2747
  %v2749 = vrcp.pop %v2748
  %v2750 = vmul.f32 %v2745, %v2749
  %v2751 = vsel %vm2443, %v2750, 0.0
  %v2753 = vrot.slane %v2141, 4
  %v2755 = vsel %vm2456, %v2753, 0.0
  %2757 = vrot.lane.b32.xlu0 %v2636, 32
  %v2758 = vpop.permute.xlu0 %2757
  %2761 = vrot.lane.b32.xlu0 %v2751, 48
  %v2762 = vpop.permute.xlu0 %2761
  %2765 = vrot.lane.b32.xlu0 %v2739, 64
  %v2766 = vpop.permute.xlu0 %2765
  %2769 = vrot.lane.b32.xlu0 %v2755, 48
  %v2770 = vpop.permute.xlu0 %2769
  %v2772 = vsel %vm2155, %v2592, %v2758
  %v2773 = vsel %vm2475, %v2772, %v2762
  %v2774 = vsel %vm2477, %v2773, %v2766
  %v2775 = vsel %vm2479, %v2774, %v2770
  %v2776 = vsel %vm2481, %v2775, 0.0
  %s2777 = scalar_lea.vmem %s7, 8
  %2778 = vst [vmem:[%s2777] sm:$0xff] %v2776
  // Predicated region
  $region30: #{two_stage_detr_vrd_forward.1} parent=0 // pred_check
    _
  $region31: #{two_stage_detr_vrd_forward.1} parent=0 // pred_check_branch
    %2780 = sbr.rel (0) target = $region33
  $region32: #{two_stage_detr_vrd_forward.1} parent=0 // pred_region
    _
  $region33: #{two_stage_detr_vrd_forward.1} parent=0 // pred_fallthru
    _
  // Predicated region
  $region34: #{two_stage_detr_vrd_forward.1} parent=0 // pred_check
    _
  $region35: #{two_stage_detr_vrd_forward.1} parent=0 // pred_check_branch
    %2782 = sbr.rel (0) target = $region37
  $region36: #{two_stage_detr_vrd_forward.1} parent=0 // pred_region
    _
  $region37: #{two_stage_detr_vrd_forward.1} parent=0 // pred_fallthru
    _

</llo_original>
